<compile_context>
chip_gen: v7x
topology: tpu7x:2x2x1
jax: 0.10.0
libtpu: 0.0.40
codegen_flags: <defaults>
</compile_context>

<pallas_src>
import jax
import jax.numpy as jnp
from jax.experimental import pallas as pl
from jax.experimental.pallas import tpu as pltpu


def _adaptive_bounds(in_size: int, out_size: int):
    """PyTorch adaptive-pool window boundaries: start=floor(i*H/O), end=ceil((i+1)*H/O)."""
    bounds = []
    for i in range(out_size):
        start = (i * in_size) // out_size
        end = -((-(i + 1) * in_size) // out_size)  # ceil division
        bounds.append((start, end))
    return bounds


def _vmem_capacity_bytes() -> int:
    """Generation-aware VMEM capacity (falls back to the smallest, v7x's 64 MiB)."""
    try:
        info = pltpu.get_tpu_info()
        cap = getattr(info, "vmem_capacity_bytes", None)
        if cap:
            return int(cap)
    except Exception:
        pass
    return 64 * 1024 * 1024


def _pick_block_b(batch: int, per_item_padded_bytes: int, budget_bytes: int):
    """Largest batch block that (a) divides batch, (b) is a multiple of 8 (or the
    full batch), (c) keeps ONE x buffer under `budget_bytes` (the pipeline
    double-buffers it), and (d) leaves >= 2 grid steps when the batch can be
    split, so dimension_semantics=("parallel",) can shard across v7x's 2 TCs."""
    cands = sorted({d for d in range(8, batch + 1, 8) if batch % d == 0} | {batch})
    fits = [d for d in cands if d * per_item_padded_bytes <= budget_bytes]
    pool = fits if fits else cands[:1]
    bb = max(pool)
    if bb == batch:
        smaller = [d for d in pool if d <= batch // 2]
        if smaller:
            bb = max(smaller)
    return bb


def standard_head_nhwc(x_nhwc, alpha, fc_w, fc_b, pool_size, *,
                       block_b=None, use_bf16_matmul=False):
    """Fused SDNPool + flatten + Linear.

    x_nhwc: [B, H, W, C] float32 (channels-last: produce NHWC upstream so no
            activation transpose sits in front of this kernel).
    alpha:  [1] float32 (SDNPool mixing parameter).
    fc_w:   [N, C*HO*WO] float32 (PyTorch Linear weight, NCHW-flatten order).
    fc_b:   [N] float32.
    returns [B, N] float32 logits.
    """
    if isinstance(pool_size, int):
        pool_size = (pool_size, pool_size)
    HO, WO = pool_size
    B, H, W, C = x_nhwc.shape
    N, Fw = fc_w.shape
    F = C * HO * WO
    assert Fw == F, (Fw, C, HO, WO)

    # Lane repacking: channels-last (B,H,W,C) -> (B,H,W*C) is a free reshape of a
    # contiguous array; W*C sits on the 128-lane axis (32x less VMEM padding
    # than a C=4 trailing dim).  W-windows become static lane slices.
    x_packed = x_nhwc.reshape(B, H, W * C).astype(jnp.float32)

    # Padded VMEM footprint of one batch item of the x block: sublanes (H) pad
    # to 8, lanes (W*C) pad to 128.
    per_item_padded = (-(-H // 8) * 8) * (-(-(W * C) // 128) * 128) * 4

    cap = _vmem_capacity_bytes()
    # Per-buffer budget for the x block (pipeline double-buffers it):
    # ~8 MiB on v7x (64 MiB VMEM), 16 MiB on v5e/v6e (128 MiB VMEM).
    x_budget = max(4 * 1024 * 1024, min(cap // 8, 16 * 1024 * 1024))
    vmem_limit = int(min(cap * 3 // 4, 96 * 1024 * 1024))

    if block_b is None:
        block_b = _pick_block_b(B, per_item_padded, x_budget)
    assert B % block_b == 0, (B, block_b)
    assert block_b == B or block_b % 8 == 0, "batch block must be 8-aligned"

    h_bounds = _adaptive_bounds(H, HO)
    w_bounds = _adaptive_bounds(W, WO)

    # Flatten the (tiny) FC weight once at trace time into (F, N_pad) matching
    # the kernel's pooled-feature order (oh, ow, c):
    #   w_flat[(oh*WO+ow)*C + c, n] == fc_w[n, c*HO*WO + oh*WO + ow]
    # N is zero-padded to 128 lanes for a lane-dense output store / full MXU
    # N tile; the pad is sliced off after the call.
    N_pad = -(-N // 128) * 128
    w_dtype = jnp.bfloat16 if use_bf16_matmul else jnp.float32
    w_flat = jnp.transpose(fc_w.reshape(N, C, HO, WO), (2, 3, 1, 0)).reshape(F, N)
    w_pad = jnp.zeros((F, N_pad), jnp.float32).at[:, :N].set(
        w_flat.astype(jnp.float32)).astype(w_dtype)
    b_pad = jnp.zeros((1, N_pad), jnp.float32).at[:, :N].set(
        fc_b.reshape(1, N).astype(jnp.float32))

    def kernel(alpha_ref, x_ref, w_ref, b_ref, o_ref, pooled_ref):
        # Hoisted alpha broadcast (JAX doesn't CSE broadcast_in_dim); every
        # window result shares the (block_b, C) shape.
        a_vec = jnp.full((block_b, C), alpha_ref[0], dtype=jnp.float32)

        for oh, (h0, h1) in enumerate(h_bounds):
            # H-window reduction hoisted out of the W loop (band reuse),
            # vectorized over the whole batch block.
            band = x_ref[:, h0:h1, :]              # (block_b, kh, W*C)
            band_max = jnp.max(band, axis=1)       # (block_b, W*C)
            band_sum = jnp.sum(band, axis=1)       # (block_b, W*C)
            for ow, (w0, w1) in enumerate(w_bounds):
                kw = w1 - w0
                mx = band_max[:, w0 * C:(w0 + 1) * C]
                sm = band_sum[:, w0 * C:(w0 + 1) * C]
                for j in range(1, kw):             # kw is tiny & static
                    lo = (w0 + j) * C
                    mx = jnp.maximum(mx, band_max[:, lo:lo + C])
                    sm = sm + band_sum[:, lo:lo + C]
                av = sm * (1.0 / float((h1 - h0) * kw))
                # alpha*max + (1-alpha)*avg == avg + alpha*(max - avg)
                base = (oh * WO + ow) * C
                pooled_ref[:, base:base + C] = av + a_vec * (mx - av)

        # ONE fused (block_b, F) x (F, N_pad) MXU matmul per grid step and a
        # single lane-dense output store.
        lhs = pooled_ref[...].astype(w_ref.dtype)
        o_ref[...] = jnp.dot(lhs, w_ref[...],
                             preferred_element_type=jnp.float32) + b_ref[...]

    grid = (B // block_b,)
    # TODO(synk): for large heads (C>=512, N>=1000) single-buffer the
    # grid-invariant weight (pipeline_mode=pl.Buffered(1)) or tile N onto a
    # second parallel grid axis to stay inside v7x's 64 MiB VMEM.
    out_pad = pl.pallas_call(
        kernel,
        out_shape=jax.ShapeDtypeStruct((B, N_pad), jnp.float32),
        grid=grid,
        in_specs=[
            pl.BlockSpec(memory_space=pltpu.MemorySpace.SMEM),            # alpha
            pl.BlockSpec((block_b, H, W * C), lambda i: (i, 0, 0)),       # x packed
            pl.BlockSpec((F, N_pad), lambda i: (0, 0)),                   # weight
            pl.BlockSpec((1, N_pad), lambda i: (0, 0)),                   # bias
        ],
        out_specs=pl.BlockSpec((block_b, N_pad), lambda i: (i, 0)),
        scratch_shapes=[pltpu.VMEM((block_b, F), jnp.float32)],           # pooled
        compiler_params=pltpu.CompilerParams(
            dimension_semantics=("parallel",),
            vmem_limit_bytes=vmem_limit,
        ),
    )(jnp.asarray(alpha, jnp.float32).reshape((1,)), x_packed, w_pad, b_pad)
    return out_pad[:, :N]


def standard_head_nchw(x_nchw, alpha, fc_w, fc_b, pool_size, **kw):
    """NCHW convenience wrapper. NOTE: prefer producing NHWC upstream — this
    transpose is a full extra HBM read+write of the activation tensor."""
    return standard_head_nhwc(jnp.transpose(x_nchw, (0, 2, 3, 1)),
                              alpha, fc_w, fc_b, pool_size, **kw)


def ref_standard_head_nchw(x_nchw, alpha, fc_w, fc_b, pool_size):
    """Pure-JAX reference replicating the PyTorch module math (NCHW)."""
    if isinstance(pool_size, int):
        pool_size = (pool_size, pool_size)
    B, C, H, W = x_nchw.shape
    HO, WO = pool_size
    h_bounds = _adaptive_bounds(H, HO)
    w_bounds = _adaptive_bounds(W, WO)
    rows = []
    for h0, h1 in h_bounds:
        cols = []
        for w0, w1 in w_bounds:
            win = x_nchw[:, :, h0:h1, w0:w1]
            mx = jnp.max(win, axis=(2, 3))
            av = jnp.mean(win, axis=(2, 3))
            cols.append(alpha[0] * mx + (1.0 - alpha[0]) * av)
        rows.append(jnp.stack(cols, axis=-1))
    pooled = jnp.stack(rows, axis=-2)          # (B, C, HO, WO)
    flat = pooled.reshape(B, -1)               # matches torch x.view(B, -1)
    return flat @ fc_w.T + fc_b


if __name__ == "__main__":
    key = jax.random.PRNGKey(0)
    k_x, k_a, k_w, k_b = jax.random.split(key, 4)

    B, C, H, W = 16, 4, 16, 16
    pool_size = 4
    num_classes = 10
    feat = C * pool_size * pool_size

    # Activations are produced directly in NHWC (channels-last) so no data
    # transpose sits in front of the kernel.
    x_nhwc = jax.random.normal(k_x, (B, H, W, C), dtype=jnp.float32)
    alpha = jax.random.uniform(k_a, (1,), dtype=jnp.float32)      # ~ torch.rand(1)
    fc_w = jax.random.normal(k_w, (num_classes, feat), dtype=jnp.float32) * 0.05
    fc_b = jax.random.normal(k_b, (num_classes,), dtype=jnp.float32) * 0.05

    # Auto-picked block_b -> 8 here (2 parallel grid steps of 8 samples each),
    # exercising the batched pipeline and the index maps.
    out = standard_head_nhwc(x_nhwc, alpha, fc_w, fc_b, pool_size)
    out = jax.block_until_ready(out)

    # Reference = PyTorch math (NCHW view of the same data).
    x_nchw = jnp.transpose(x_nhwc, (0, 3, 1, 2))
    ref = ref_standard_head_nchw(x_nchw, alpha, fc_w, fc_b, pool_size)

    assert out.shape == (B, num_classes), out.shape
    # Tightened vs. previous 2e-2; small slack retained for MXU f32 matmul
    # pass behaviour differences vs XLA dot.
    err = float(jnp.max(jnp.abs(out - ref)))
    assert jnp.allclose(out, ref, atol=2e-3, rtol=2e-3), err
    print("KERNEL_OK")
</pallas_src>

<mosaic_0001>
module attributes {stable_mosaic.version = 11 : i64} {
  func.func @kernel(%arg0: i32, %arg1: memref<1xf32, #tpu.memory_space<smem>>, %arg2: memref<8x16x64xf32, #tpu.memory_space<vmem>>, %arg3: memref<64x128xf32, #tpu.memory_space<vmem>>, %arg4: memref<1x128xf32, #tpu.memory_space<vmem>>, %arg5: memref<8x128xf32, #tpu.memory_space<vmem>>, %arg6: memref<8x64xf32, #tpu.memory_space<vmem>>) attributes {dimension_semantics = [#tpu.dimension_semantics<parallel>], iteration_bounds = array<i64: 2>, scalar_prefetch = 0 : i64, scratch_operands = 1 : i64, tpu.core_type = #tpu.core_type<tc>, window_params = [{transform_indices = @transform_0, window_bounds = array<i64: 1>}, {transform_indices = @transform_1, window_bounds = array<i64: 8, 16, 64>}, {pipeline_mode = #tpu.pipeline_mode<synchronous>, transform_indices = @transform_2, window_bounds = array<i64: 64, 128>}, {pipeline_mode = #tpu.pipeline_mode<synchronous>, transform_indices = @transform_3, window_bounds = array<i64: 1, 128>}, {transform_indices = @transform_4, window_bounds = array<i64: 8, 128>}]} {
    %c0 = arith.constant 0 : index
    %0 = memref.load %arg1[%c0] : memref<1xf32, #tpu.memory_space<smem>>
    %1 = vector.broadcast %0 : f32 to vector<8x4xf32>
    %c0_0 = arith.constant 0 : index
    %c0_1 = arith.constant 0 : index
    %c0_2 = arith.constant 0 : index
    %2 = vector.load %arg2[%c0_0, %c0_1, %c0_2] : memref<8x16x64xf32, #tpu.memory_space<vmem>>, vector<8x4x64xf32>
    %cst = arith.constant dense<0xFF800000> : vector<8x64xf32>
    %3 = vector.multi_reduction <maximumf>, %2, %cst [1] : vector<8x4x64xf32> to vector<8x64xf32>
    %cst_3 = arith.constant dense<0.000000e+00> : vector<8x64xf32>
    %4 = vector.multi_reduction <add>, %2, %cst_3 [1] : vector<8x4x64xf32> to vector<8x64xf32>
    %5 = vector.extract_strided_slice %3 {offsets = [0, 0], sizes = [8, 4], strides = [1, 1]} : vector<8x64xf32> to vector<8x4xf32>
    %6 = vector.extract_strided_slice %4 {offsets = [0, 0], sizes = [8, 4], strides = [1, 1]} : vector<8x64xf32> to vector<8x4xf32>
    %7 = vector.extract_strided_slice %3 {offsets = [0, 4], sizes = [8, 4], strides = [1, 1]} : vector<8x64xf32> to vector<8x4xf32>
    %8 = arith.maximumf %5, %7 : vector<8x4xf32>
    %9 = vector.extract_strided_slice %4 {offsets = [0, 4], sizes = [8, 4], strides = [1, 1]} : vector<8x64xf32> to vector<8x4xf32>
    %10 = arith.addf %6, %9 : vector<8x4xf32>
    %11 = vector.extract_strided_slice %3 {offsets = [0, 8], sizes = [8, 4], strides = [1, 1]} : vector<8x64xf32> to vector<8x4xf32>
    %12 = arith.maximumf %8, %11 : vector<8x4xf32>
    %13 = vector.extract_strided_slice %4 {offsets = [0, 8], sizes = [8, 4], strides = [1, 1]} : vector<8x64xf32> to vector<8x4xf32>
    %14 = arith.addf %10, %13 : vector<8x4xf32>
    %15 = vector.extract_strided_slice %3 {offsets = [0, 12], sizes = [8, 4], strides = [1, 1]} : vector<8x64xf32> to vector<8x4xf32>
    %16 = arith.maximumf %12, %15 : vector<8x4xf32>
    %17 = vector.extract_strided_slice %4 {offsets = [0, 12], sizes = [8, 4], strides = [1, 1]} : vector<8x64xf32> to vector<8x4xf32>
    %18 = arith.addf %14, %17 : vector<8x4xf32>
    %cst_4 = arith.constant 6.250000e-02 : f32
    %19 = vector.broadcast %cst_4 : f32 to vector<8x4xf32>
    %20 = arith.mulf %18, %19 : vector<8x4xf32>
    %21 = arith.subf %16, %20 : vector<8x4xf32>
    %22 = arith.mulf %1, %21 : vector<8x4xf32>
    %23 = arith.addf %20, %22 : vector<8x4xf32>
    %c0_5 = arith.constant 0 : index
    %c0_6 = arith.constant 0 : index
    %24 = vector.load %arg6[%c0_5, %c0_6] : memref<8x64xf32, #tpu.memory_space<vmem>>, vector<8x4xf32>
    tpu.vector_store %arg6[%c0_5, %c0_6], %23 {strides = array<i32>} : memref<8x64xf32, #tpu.memory_space<vmem>>, vector<8x4xf32>,
    %25 = vector.extract_strided_slice %3 {offsets = [0, 16], sizes = [8, 4], strides = [1, 1]} : vector<8x64xf32> to vector<8x4xf32>
    %26 = vector.extract_strided_slice %4 {offsets = [0, 16], sizes = [8, 4], strides = [1, 1]} : vector<8x64xf32> to vector<8x4xf32>
    %27 = vector.extract_strided_slice %3 {offsets = [0, 20], sizes = [8, 4], strides = [1, 1]} : vector<8x64xf32> to vector<8x4xf32>
    %28 = arith.maximumf %25, %27 : vector<8x4xf32>
    %29 = vector.extract_strided_slice %4 {offsets = [0, 20], sizes = [8, 4], strides = [1, 1]} : vector<8x64xf32> to vector<8x4xf32>
    %30 = arith.addf %26, %29 : vector<8x4xf32>
    %31 = vector.extract_strided_slice %3 {offsets = [0, 24], sizes = [8, 4], strides = [1, 1]} : vector<8x64xf32> to vector<8x4xf32>
    %32 = arith.maximumf %28, %31 : vector<8x4xf32>
    %33 = vector.extract_strided_slice %4 {offsets = [0, 24], sizes = [8, 4], strides = [1, 1]} : vector<8x64xf32> to vector<8x4xf32>
    %34 = arith.addf %30, %33 : vector<8x4xf32>
    %35 = vector.extract_strided_slice %3 {offsets = [0, 28], sizes = [8, 4], strides = [1, 1]} : vector<8x64xf32> to vector<8x4xf32>
    %36 = arith.maximumf %32, %35 : vector<8x4xf32>
    %37 = vector.extract_strided_slice %4 {offsets = [0, 28], sizes = [8, 4], strides = [1, 1]} : vector<8x64xf32> to vector<8x4xf32>
    %38 = arith.addf %34, %37 : vector<8x4xf32>
    %cst_7 = arith.constant 6.250000e-02 : f32
    %39 = vector.broadcast %cst_7 : f32 to vector<8x4xf32>
    %40 = arith.mulf %38, %39 : vector<8x4xf32>
    %41 = arith.subf %36, %40 : vector<8x4xf32>
    %42 = arith.mulf %1, %41 : vector<8x4xf32>
    %43 = arith.addf %40, %42 : vector<8x4xf32>
    %c0_8 = arith.constant 0 : index
    %c4 = arith.constant 4 : index
    %44 = vector.load %arg6[%c0_8, %c4] : memref<8x64xf32, #tpu.memory_space<vmem>>, vector<8x4xf32>
    tpu.vector_store %arg6[%c0_8, %c4], %43 {strides = array<i32>} : memref<8x64xf32, #tpu.memory_space<vmem>>, vector<8x4xf32>,
    %45 = vector.extract_strided_slice %3 {offsets = [0, 32], sizes = [8, 4], strides = [1, 1]} : vector<8x64xf32> to vector<8x4xf32>
    %46 = vector.extract_strided_slice %4 {offsets = [0, 32], sizes = [8, 4], strides = [1, 1]} : vector<8x64xf32> to vector<8x4xf32>
    %47 = vector.extract_strided_slice %3 {offsets = [0, 36], sizes = [8, 4], strides = [1, 1]} : vector<8x64xf32> to vector<8x4xf32>
    %48 = arith.maximumf %45, %47 : vector<8x4xf32>
    %49 = vector.extract_strided_slice %4 {offsets = [0, 36], sizes = [8, 4], strides = [1, 1]} : vector<8x64xf32> to vector<8x4xf32>
    %50 = arith.addf %46, %49 : vector<8x4xf32>
    %51 = vector.extract_strided_slice %3 {offsets = [0, 40], sizes = [8, 4], strides = [1, 1]} : vector<8x64xf32> to vector<8x4xf32>
    %52 = arith.maximumf %48, %51 : vector<8x4xf32>
    %53 = vector.extract_strided_slice %4 {offsets = [0, 40], sizes = [8, 4], strides = [1, 1]} : vector<8x64xf32> to vector<8x4xf32>
    %54 = arith.addf %50, %53 : vector<8x4xf32>
    %55 = vector.extract_strided_slice %3 {offsets = [0, 44], sizes = [8, 4], strides = [1, 1]} : vector<8x64xf32> to vector<8x4xf32>
    %56 = arith.maximumf %52, %55 : vector<8x4xf32>
    %57 = vector.extract_strided_slice %4 {offsets = [0, 44], sizes = [8, 4], strides = [1, 1]} : vector<8x64xf32> to vector<8x4xf32>
    %58 = arith.addf %54, %57 : vector<8x4xf32>
    %cst_9 = arith.constant 6.250000e-02 : f32
    %59 = vector.broadcast %cst_9 : f32 to vector<8x4xf32>
    %60 = arith.mulf %58, %59 : vector<8x4xf32>
    %61 = arith.subf %56, %60 : vector<8x4xf32>
    %62 = arith.mulf %1, %61 : vector<8x4xf32>
    %63 = arith.addf %60, %62 : vector<8x4xf32>
    %c0_10 = arith.constant 0 : index
    %c8 = arith.constant 8 : index
    %64 = vector.load %arg6[%c0_10, %c8] : memref<8x64xf32, #tpu.memory_space<vmem>>, vector<8x4xf32>
    tpu.vector_store %arg6[%c0_10, %c8], %63 {strides = array<i32>} : memref<8x64xf32, #tpu.memory_space<vmem>>, vector<8x4xf32>,
    %65 = vector.extract_strided_slice %3 {offsets = [0, 48], sizes = [8, 4], strides = [1, 1]} : vector<8x64xf32> to vector<8x4xf32>
    %66 = vector.extract_strided_slice %4 {offsets = [0, 48], sizes = [8, 4], strides = [1, 1]} : vector<8x64xf32> to vector<8x4xf32>
    %67 = vector.extract_strided_slice %3 {offsets = [0, 52], sizes = [8, 4], strides = [1, 1]} : vector<8x64xf32> to vector<8x4xf32>
    %68 = arith.maximumf %65, %67 : vector<8x4xf32>
    %69 = vector.extract_strided_slice %4 {offsets = [0, 52], sizes = [8, 4], strides = [1, 1]} : vector<8x64xf32> to vector<8x4xf32>
    %70 = arith.addf %66, %69 : vector<8x4xf32>
    %71 = vector.extract_strided_slice %3 {offsets = [0, 56], sizes = [8, 4], strides = [1, 1]} : vector<8x64xf32> to vector<8x4xf32>
    %72 = arith.maximumf %68, %71 : vector<8x4xf32>
    %73 = vector.extract_strided_slice %4 {offsets = [0, 56], sizes = [8, 4], strides = [1, 1]} : vector<8x64xf32> to vector<8x4xf32>
    %74 = arith.addf %70, %73 : vector<8x4xf32>
    %75 = vector.extract_strided_slice %3 {offsets = [0, 60], sizes = [8, 4], strides = [1, 1]} : vector<8x64xf32> to vector<8x4xf32>
    %76 = arith.maximumf %72, %75 : vector<8x4xf32>
    %77 = vector.extract_strided_slice %4 {offsets = [0, 60], sizes = [8, 4], strides = [1, 1]} : vector<8x64xf32> to vector<8x4xf32>
    %78 = arith.addf %74, %77 : vector<8x4xf32>
    %cst_11 = arith.constant 6.250000e-02 : f32
    %79 = vector.broadcast %cst_11 : f32 to vector<8x4xf32>
    %80 = arith.mulf %78, %79 : vector<8x4xf32>
    %81 = arith.subf %76, %80 : vector<8x4xf32>
    %82 = arith.mulf %1, %81 : vector<8x4xf32>
    %83 = arith.addf %80, %82 : vector<8x4xf32>
    %c0_12 = arith.constant 0 : index
    %c12 = arith.constant 12 : index
    %84 = vector.load %arg6[%c0_12, %c12] : memref<8x64xf32, #tpu.memory_space<vmem>>, vector<8x4xf32>
    tpu.vector_store %arg6[%c0_12, %c12], %83 {strides = array<i32>} : memref<8x64xf32, #tpu.memory_space<vmem>>, vector<8x4xf32>,
    %c0_13 = arith.constant 0 : index
    %c4_14 = arith.constant 4 : index
    %c0_15 = arith.constant 0 : index
    %85 = vector.load %arg2[%c0_13, %c4_14, %c0_15] : memref<8x16x64xf32, #tpu.memory_space<vmem>>, vector<8x4x64xf32>
    %cst_16 = arith.constant dense<0xFF800000> : vector<8x64xf32>
    %86 = vector.multi_reduction <maximumf>, %85, %cst_16 [1] : vector<8x4x64xf32> to vector<8x64xf32>
    %cst_17 = arith.constant dense<0.000000e+00> : vector<8x64xf32>
    %87 = vector.multi_reduction <add>, %85, %cst_17 [1] : vector<8x4x64xf32> to vector<8x64xf32>
    %88 = vector.extract_strided_slice %86 {offsets = [0, 0], sizes = [8, 4], strides = [1, 1]} : vector<8x64xf32> to vector<8x4xf32>
    %89 = vector.extract_strided_slice %87 {offsets = [0, 0], sizes = [8, 4], strides = [1, 1]} : vector<8x64xf32> to vector<8x4xf32>
    %90 = vector.extract_strided_slice %86 {offsets = [0, 4], sizes = [8, 4], strides = [1, 1]} : vector<8x64xf32> to vector<8x4xf32>
    %91 = arith.maximumf %88, %90 : vector<8x4xf32>
    %92 = vector.extract_strided_slice %87 {offsets = [0, 4], sizes = [8, 4], strides = [1, 1]} : vector<8x64xf32> to vector<8x4xf32>
    %93 = arith.addf %89, %92 : vector<8x4xf32>
    %94 = vector.extract_strided_slice %86 {offsets = [0, 8], sizes = [8, 4], strides = [1, 1]} : vector<8x64xf32> to vector<8x4xf32>
    %95 = arith.maximumf %91, %94 : vector<8x4xf32>
    %96 = vector.extract_strided_slice %87 {offsets = [0, 8], sizes = [8, 4], strides = [1, 1]} : vector<8x64xf32> to vector<8x4xf32>
    %97 = arith.addf %93, %96 : vector<8x4xf32>
    %98 = vector.extract_strided_slice %86 {offsets = [0, 12], sizes = [8, 4], strides = [1, 1]} : vector<8x64xf32> to vector<8x4xf32>
    %99 = arith.maximumf %95, %98 : vector<8x4xf32>
    %100 = vector.extract_strided_slice %87 {offsets = [0, 12], sizes = [8, 4], strides = [1, 1]} : vector<8x64xf32> to vector<8x4xf32>
    %101 = arith.addf %97, %100 : vector<8x4xf32>
    %cst_18 = arith.constant 6.250000e-02 : f32
    %102 = vector.broadcast %cst_18 : f32 to vector<8x4xf32>
    %103 = arith.mulf %101, %102 : vector<8x4xf32>
    %104 = arith.subf %99, %103 : vector<8x4xf32>
    %105 = arith.mulf %1, %104 : vector<8x4xf32>
    %106 = arith.addf %103, %105 : vector<8x4xf32>
    %c0_19 = arith.constant 0 : index
    %c16 = arith.constant 16 : index
    %107 = vector.load %arg6[%c0_19, %c16] : memref<8x64xf32, #tpu.memory_space<vmem>>, vector<8x4xf32>
    tpu.vector_store %arg6[%c0_19, %c16], %106 {strides = array<i32>} : memref<8x64xf32, #tpu.memory_space<vmem>>, vector<8x4xf32>,
    %108 = vector.extract_strided_slice %86 {offsets = [0, 16], sizes = [8, 4], strides = [1, 1]} : vector<8x64xf32> to vector<8x4xf32>
    %109 = vector.extract_strided_slice %87 {offsets = [0, 16], sizes = [8, 4], strides = [1, 1]} : vector<8x64xf32> to vector<8x4xf32>
    %110 = vector.extract_strided_slice %86 {offsets = [0, 20], sizes = [8, 4], strides = [1, 1]} : vector<8x64xf32> to vector<8x4xf32>
    %111 = arith.maximumf %108, %110 : vector<8x4xf32>
    %112 = vector.extract_strided_slice %87 {offsets = [0, 20], sizes = [8, 4], strides = [1, 1]} : vector<8x64xf32> to vector<8x4xf32>
    %113 = arith.addf %109, %112 : vector<8x4xf32>
    %114 = vector.extract_strided_slice %86 {offsets = [0, 24], sizes = [8, 4], strides = [1, 1]} : vector<8x64xf32> to vector<8x4xf32>
    %115 = arith.maximumf %111, %114 : vector<8x4xf32>
    %116 = vector.extract_strided_slice %87 {offsets = [0, 24], sizes = [8, 4], strides = [1, 1]} : vector<8x64xf32> to vector<8x4xf32>
    %117 = arith.addf %113, %116 : vector<8x4xf32>
    %118 = vector.extract_strided_slice %86 {offsets = [0, 28], sizes = [8, 4], strides = [1, 1]} : vector<8x64xf32> to vector<8x4xf32>
    %119 = arith.maximumf %115, %118 : vector<8x4xf32>
    %120 = vector.extract_strided_slice %87 {offsets = [0, 28], sizes = [8, 4], strides = [1, 1]} : vector<8x64xf32> to vector<8x4xf32>
    %121 = arith.addf %117, %120 : vector<8x4xf32>
    %cst_20 = arith.constant 6.250000e-02 : f32
    %122 = vector.broadcast %cst_20 : f32 to vector<8x4xf32>
    %123 = arith.mulf %121, %122 : vector<8x4xf32>
    %124 = arith.subf %119, %123 : vector<8x4xf32>
    %125 = arith.mulf %1, %124 : vector<8x4xf32>
    %126 = arith.addf %123, %125 : vector<8x4xf32>
    %c0_21 = arith.constant 0 : index
    %c20 = arith.constant 20 : index
    %127 = vector.load %arg6[%c0_21, %c20] : memref<8x64xf32, #tpu.memory_space<vmem>>, vector<8x4xf32>
    tpu.vector_store %arg6[%c0_21, %c20], %126 {strides = array<i32>} : memref<8x64xf32, #tpu.memory_space<vmem>>, vector<8x4xf32>,
    %128 = vector.extract_strided_slice %86 {offsets = [0, 32], sizes = [8, 4], strides = [1, 1]} : vector<8x64xf32> to vector<8x4xf32>
    %129 = vector.extract_strided_slice %87 {offsets = [0, 32], sizes = [8, 4], strides = [1, 1]} : vector<8x64xf32> to vector<8x4xf32>
    %130 = vector.extract_strided_slice %86 {offsets = [0, 36], sizes = [8, 4], strides = [1, 1]} : vector<8x64xf32> to vector<8x4xf32>
    %131 = arith.maximumf %128, %130 : vector<8x4xf32>
    %132 = vector.extract_strided_slice %87 {offsets = [0, 36], sizes = [8, 4], strides = [1, 1]} : vector<8x64xf32> to vector<8x4xf32>
    %133 = arith.addf %129, %132 : vector<8x4xf32>
    %134 = vector.extract_strided_slice %86 {offsets = [0, 40], sizes = [8, 4], strides = [1, 1]} : vector<8x64xf32> to vector<8x4xf32>
    %135 = arith.maximumf %131, %134 : vector<8x4xf32>
    %136 = vector.extract_strided_slice %87 {offsets = [0, 40], sizes = [8, 4], strides = [1, 1]} : vector<8x64xf32> to vector<8x4xf32>
    %137 = arith.addf %133, %136 : vector<8x4xf32>
    %138 = vector.extract_strided_slice %86 {offsets = [0, 44], sizes = [8, 4], strides = [1, 1]} : vector<8x64xf32> to vector<8x4xf32>
    %139 = arith.maximumf %135, %138 : vector<8x4xf32>
    %140 = vector.extract_strided_slice %87 {offsets = [0, 44], sizes = [8, 4], strides = [1, 1]} : vector<8x64xf32> to vector<8x4xf32>
    %141 = arith.addf %137, %140 : vector<8x4xf32>
    %cst_22 = arith.constant 6.250000e-02 : f32
    %142 = vector.broadcast %cst_22 : f32 to vector<8x4xf32>
    %143 = arith.mulf %141, %142 : vector<8x4xf32>
    %144 = arith.subf %139, %143 : vector<8x4xf32>
    %145 = arith.mulf %1, %144 : vector<8x4xf32>
    %146 = arith.addf %143, %145 : vector<8x4xf32>
    %c0_23 = arith.constant 0 : index
    %c24 = arith.constant 24 : index
    %147 = vector.load %arg6[%c0_23, %c24] : memref<8x64xf32, #tpu.memory_space<vmem>>, vector<8x4xf32>
    tpu.vector_store %arg6[%c0_23, %c24], %146 {strides = array<i32>} : memref<8x64xf32, #tpu.memory_space<vmem>>, vector<8x4xf32>,
    %148 = vector.extract_strided_slice %86 {offsets = [0, 48], sizes = [8, 4], strides = [1, 1]} : vector<8x64xf32> to vector<8x4xf32>
    %149 = vector.extract_strided_slice %87 {offsets = [0, 48], sizes = [8, 4], strides = [1, 1]} : vector<8x64xf32> to vector<8x4xf32>
    %150 = vector.extract_strided_slice %86 {offsets = [0, 52], sizes = [8, 4], strides = [1, 1]} : vector<8x64xf32> to vector<8x4xf32>
    %151 = arith.maximumf %148, %150 : vector<8x4xf32>
    %152 = vector.extract_strided_slice %87 {offsets = [0, 52], sizes = [8, 4], strides = [1, 1]} : vector<8x64xf32> to vector<8x4xf32>
    %153 = arith.addf %149, %152 : vector<8x4xf32>
    %154 = vector.extract_strided_slice %86 {offsets = [0, 56], sizes = [8, 4], strides = [1, 1]} : vector<8x64xf32> to vector<8x4xf32>
    %155 = arith.maximumf %151, %154 : vector<8x4xf32>
    %156 = vector.extract_strided_slice %87 {offsets = [0, 56], sizes = [8, 4], strides = [1, 1]} : vector<8x64xf32> to vector<8x4xf32>
    %157 = arith.addf %153, %156 : vector<8x4xf32>
    %158 = vector.extract_strided_slice %86 {offsets = [0, 60], sizes = [8, 4], strides = [1, 1]} : vector<8x64xf32> to vector<8x4xf32>
    %159 = arith.maximumf %155, %158 : vector<8x4xf32>
    %160 = vector.extract_strided_slice %87 {offsets = [0, 60], sizes = [8, 4], strides = [1, 1]} : vector<8x64xf32> to vector<8x4xf32>
    %161 = arith.addf %157, %160 : vector<8x4xf32>
    %cst_24 = arith.constant 6.250000e-02 : f32
    %162 = vector.broadcast %cst_24 : f32 to vector<8x4xf32>
    %163 = arith.mulf %161, %162 : vector<8x4xf32>
    %164 = arith.subf %159, %163 : vector<8x4xf32>
    %165 = arith.mulf %1, %164 : vector<8x4xf32>
    %166 = arith.addf %163, %165 : vector<8x4xf32>
    %c0_25 = arith.constant 0 : index
    %c28 = arith.constant 28 : index
    %167 = vector.load %arg6[%c0_25, %c28] : memref<8x64xf32, #tpu.memory_space<vmem>>, vector<8x4xf32>
    tpu.vector_store %arg6[%c0_25, %c28], %166 {strides = array<i32>} : memref<8x64xf32, #tpu.memory_space<vmem>>, vector<8x4xf32>,
    %c0_26 = arith.constant 0 : index
    %c8_27 = arith.constant 8 : index
    %c0_28 = arith.constant 0 : index
    %168 = vector.load %arg2[%c0_26, %c8_27, %c0_28] : memref<8x16x64xf32, #tpu.memory_space<vmem>>, vector<8x4x64xf32>
    %cst_29 = arith.constant dense<0xFF800000> : vector<8x64xf32>
    %169 = vector.multi_reduction <maximumf>, %168, %cst_29 [1] : vector<8x4x64xf32> to vector<8x64xf32>
    %cst_30 = arith.constant dense<0.000000e+00> : vector<8x64xf32>
    %170 = vector.multi_reduction <add>, %168, %cst_30 [1] : vector<8x4x64xf32> to vector<8x64xf32>
    %171 = vector.extract_strided_slice %169 {offsets = [0, 0], sizes = [8, 4], strides = [1, 1]} : vector<8x64xf32> to vector<8x4xf32>
    %172 = vector.extract_strided_slice %170 {offsets = [0, 0], sizes = [8, 4], strides = [1, 1]} : vector<8x64xf32> to vector<8x4xf32>
    %173 = vector.extract_strided_slice %169 {offsets = [0, 4], sizes = [8, 4], strides = [1, 1]} : vector<8x64xf32> to vector<8x4xf32>
    %174 = arith.maximumf %171, %173 : vector<8x4xf32>
    %175 = vector.extract_strided_slice %170 {offsets = [0, 4], sizes = [8, 4], strides = [1, 1]} : vector<8x64xf32> to vector<8x4xf32>
    %176 = arith.addf %172, %175 : vector<8x4xf32>
    %177 = vector.extract_strided_slice %169 {offsets = [0, 8], sizes = [8, 4], strides = [1, 1]} : vector<8x64xf32> to vector<8x4xf32>
    %178 = arith.maximumf %174, %177 : vector<8x4xf32>
    %179 = vector.extract_strided_slice %170 {offsets = [0, 8], sizes = [8, 4], strides = [1, 1]} : vector<8x64xf32> to vector<8x4xf32>
    %180 = arith.addf %176, %179 : vector<8x4xf32>
    %181 = vector.extract_strided_slice %169 {offsets = [0, 12], sizes = [8, 4], strides = [1, 1]} : vector<8x64xf32> to vector<8x4xf32>
    %182 = arith.maximumf %178, %181 : vector<8x4xf32>
    %183 = vector.extract_strided_slice %170 {offsets = [0, 12], sizes = [8, 4], strides = [1, 1]} : vector<8x64xf32> to vector<8x4xf32>
    %184 = arith.addf %180, %183 : vector<8x4xf32>
    %cst_31 = arith.constant 6.250000e-02 : f32
    %185 = vector.broadcast %cst_31 : f32 to vector<8x4xf32>
    %186 = arith.mulf %184, %185 : vector<8x4xf32>
    %187 = arith.subf %182, %186 : vector<8x4xf32>
    %188 = arith.mulf %1, %187 : vector<8x4xf32>
    %189 = arith.addf %186, %188 : vector<8x4xf32>
    %c0_32 = arith.constant 0 : index
    %c32 = arith.constant 32 : index
    %190 = vector.load %arg6[%c0_32, %c32] : memref<8x64xf32, #tpu.memory_space<vmem>>, vector<8x4xf32>
    tpu.vector_store %arg6[%c0_32, %c32], %189 {strides = array<i32>} : memref<8x64xf32, #tpu.memory_space<vmem>>, vector<8x4xf32>,
    %191 = vector.extract_strided_slice %169 {offsets = [0, 16], sizes = [8, 4], strides = [1, 1]} : vector<8x64xf32> to vector<8x4xf32>
    %192 = vector.extract_strided_slice %170 {offsets = [0, 16], sizes = [8, 4], strides = [1, 1]} : vector<8x64xf32> to vector<8x4xf32>
    %193 = vector.extract_strided_slice %169 {offsets = [0, 20], sizes = [8, 4], strides = [1, 1]} : vector<8x64xf32> to vector<8x4xf32>
    %194 = arith.maximumf %191, %193 : vector<8x4xf32>
    %195 = vector.extract_strided_slice %170 {offsets = [0, 20], sizes = [8, 4], strides = [1, 1]} : vector<8x64xf32> to vector<8x4xf32>
    %196 = arith.addf %192, %195 : vector<8x4xf32>
    %197 = vector.extract_strided_slice %169 {offsets = [0, 24], sizes = [8, 4], strides = [1, 1]} : vector<8x64xf32> to vector<8x4xf32>
    %198 = arith.maximumf %194, %197 : vector<8x4xf32>
    %199 = vector.extract_strided_slice %170 {offsets = [0, 24], sizes = [8, 4], strides = [1, 1]} : vector<8x64xf32> to vector<8x4xf32>
    %200 = arith.addf %196, %199 : vector<8x4xf32>
    %201 = vector.extract_strided_slice %169 {offsets = [0, 28], sizes = [8, 4], strides = [1, 1]} : vector<8x64xf32> to vector<8x4xf32>
    %202 = arith.maximumf %198, %201 : vector<8x4xf32>
    %203 = vector.extract_strided_slice %170 {offsets = [0, 28], sizes = [8, 4], strides = [1, 1]} : vector<8x64xf32> to vector<8x4xf32>
    %204 = arith.addf %200, %203 : vector<8x4xf32>
    %cst_33 = arith.constant 6.250000e-02 : f32
    %205 = vector.broadcast %cst_33 : f32 to vector<8x4xf32>
    %206 = arith.mulf %204, %205 : vector<8x4xf32>
    %207 = arith.subf %202, %206 : vector<8x4xf32>
    %208 = arith.mulf %1, %207 : vector<8x4xf32>
    %209 = arith.addf %206, %208 : vector<8x4xf32>
    %c0_34 = arith.constant 0 : index
    %c36 = arith.constant 36 : index
    %210 = vector.load %arg6[%c0_34, %c36] : memref<8x64xf32, #tpu.memory_space<vmem>>, vector<8x4xf32>
    tpu.vector_store %arg6[%c0_34, %c36], %209 {strides = array<i32>} : memref<8x64xf32, #tpu.memory_space<vmem>>, vector<8x4xf32>,
    %211 = vector.extract_strided_slice %169 {offsets = [0, 32], sizes = [8, 4], strides = [1, 1]} : vector<8x64xf32> to vector<8x4xf32>
    %212 = vector.extract_strided_slice %170 {offsets = [0, 32], sizes = [8, 4], strides = [1, 1]} : vector<8x64xf32> to vector<8x4xf32>
    %213 = vector.extract_strided_slice %169 {offsets = [0, 36], sizes = [8, 4], strides = [1, 1]} : vector<8x64xf32> to vector<8x4xf32>
    %214 = arith.maximumf %211, %213 : vector<8x4xf32>
    %215 = vector.extract_strided_slice %170 {offsets = [0, 36], sizes = [8, 4], strides = [1, 1]} : vector<8x64xf32> to vector<8x4xf32>
    %216 = arith.addf %212, %215 : vector<8x4xf32>
    %217 = vector.extract_strided_slice %169 {offsets = [0, 40], sizes = [8, 4], strides = [1, 1]} : vector<8x64xf32> to vector<8x4xf32>
    %218 = arith.maximumf %214, %217 : vector<8x4xf32>
    %219 = vector.extract_strided_slice %170 {offsets = [0, 40], sizes = [8, 4], strides = [1, 1]} : vector<8x64xf32> to vector<8x4xf32>
    %220 = arith.addf %216, %219 : vector<8x4xf32>
    %221 = vector.extract_strided_slice %169 {offsets = [0, 44], sizes = [8, 4], strides = [1, 1]} : vector<8x64xf32> to vector<8x4xf32>
    %222 = arith.maximumf %218, %221 : vector<8x4xf32>
    %223 = vector.extract_strided_slice %170 {offsets = [0, 44], sizes = [8, 4], strides = [1, 1]} : vector<8x64xf32> to vector<8x4xf32>
    %224 = arith.addf %220, %223 : vector<8x4xf32>
    %cst_35 = arith.constant 6.250000e-02 : f32
    %225 = vector.broadcast %cst_35 : f32 to vector<8x4xf32>
    %226 = arith.mulf %224, %225 : vector<8x4xf32>
    %227 = arith.subf %222, %226 : vector<8x4xf32>
    %228 = arith.mulf %1, %227 : vector<8x4xf32>
    %229 = arith.addf %226, %228 : vector<8x4xf32>
    %c0_36 = arith.constant 0 : index
    %c40 = arith.constant 40 : index
    %230 = vector.load %arg6[%c0_36, %c40] : memref<8x64xf32, #tpu.memory_space<vmem>>, vector<8x4xf32>
    tpu.vector_store %arg6[%c0_36, %c40], %229 {strides = array<i32>} : memref<8x64xf32, #tpu.memory_space<vmem>>, vector<8x4xf32>,
    %231 = vector.extract_strided_slice %169 {offsets = [0, 48], sizes = [8, 4], strides = [1, 1]} : vector<8x64xf32> to vector<8x4xf32>
    %232 = vector.extract_strided_slice %170 {offsets = [0, 48], sizes = [8, 4], strides = [1, 1]} : vector<8x64xf32> to vector<8x4xf32>
    %233 = vector.extract_strided_slice %169 {offsets = [0, 52], sizes = [8, 4], strides = [1, 1]} : vector<8x64xf32> to vector<8x4xf32>
    %234 = arith.maximumf %231, %233 : vector<8x4xf32>
    %235 = vector.extract_strided_slice %170 {offsets = [0, 52], sizes = [8, 4], strides = [1, 1]} : vector<8x64xf32> to vector<8x4xf32>
    %236 = arith.addf %232, %235 : vector<8x4xf32>
    %237 = vector.extract_strided_slice %169 {offsets = [0, 56], sizes = [8, 4], strides = [1, 1]} : vector<8x64xf32> to vector<8x4xf32>
    %238 = arith.maximumf %234, %237 : vector<8x4xf32>
    %239 = vector.extract_strided_slice %170 {offsets = [0, 56], sizes = [8, 4], strides = [1, 1]} : vector<8x64xf32> to vector<8x4xf32>
    %240 = arith.addf %236, %239 : vector<8x4xf32>
    %241 = vector.extract_strided_slice %169 {offsets = [0, 60], sizes = [8, 4], strides = [1, 1]} : vector<8x64xf32> to vector<8x4xf32>
    %242 = arith.maximumf %238, %241 : vector<8x4xf32>
    %243 = vector.extract_strided_slice %170 {offsets = [0, 60], sizes = [8, 4], strides = [1, 1]} : vector<8x64xf32> to vector<8x4xf32>
    %244 = arith.addf %240, %243 : vector<8x4xf32>
    %cst_37 = arith.constant 6.250000e-02 : f32
    %245 = vector.broadcast %cst_37 : f32 to vector<8x4xf32>
    %246 = arith.mulf %244, %245 : vector<8x4xf32>
    %247 = arith.subf %242, %246 : vector<8x4xf32>
    %248 = arith.mulf %1, %247 : vector<8x4xf32>
    %249 = arith.addf %246, %248 : vector<8x4xf32>
    %c0_38 = arith.constant 0 : index
    %c44 = arith.constant 44 : index
    %250 = vector.load %arg6[%c0_38, %c44] : memref<8x64xf32, #tpu.memory_space<vmem>>, vector<8x4xf32>
    tpu.vector_store %arg6[%c0_38, %c44], %249 {strides = array<i32>} : memref<8x64xf32, #tpu.memory_space<vmem>>, vector<8x4xf32>,
    %c0_39 = arith.constant 0 : index
    %c12_40 = arith.constant 12 : index
    %c0_41 = arith.constant 0 : index
    %251 = vector.load %arg2[%c0_39, %c12_40, %c0_41] : memref<8x16x64xf32, #tpu.memory_space<vmem>>, vector<8x4x64xf32>
    %cst_42 = arith.constant dense<0xFF800000> : vector<8x64xf32>
    %252 = vector.multi_reduction <maximumf>, %251, %cst_42 [1] : vector<8x4x64xf32> to vector<8x64xf32>
    %cst_43 = arith.constant dense<0.000000e+00> : vector<8x64xf32>
    %253 = vector.multi_reduction <add>, %251, %cst_43 [1] : vector<8x4x64xf32> to vector<8x64xf32>
    %254 = vector.extract_strided_slice %252 {offsets = [0, 0], sizes = [8, 4], strides = [1, 1]} : vector<8x64xf32> to vector<8x4xf32>
    %255 = vector.extract_strided_slice %253 {offsets = [0, 0], sizes = [8, 4], strides = [1, 1]} : vector<8x64xf32> to vector<8x4xf32>
    %256 = vector.extract_strided_slice %252 {offsets = [0, 4], sizes = [8, 4], strides = [1, 1]} : vector<8x64xf32> to vector<8x4xf32>
    %257 = arith.maximumf %254, %256 : vector<8x4xf32>
    %258 = vector.extract_strided_slice %253 {offsets = [0, 4], sizes = [8, 4], strides = [1, 1]} : vector<8x64xf32> to vector<8x4xf32>
    %259 = arith.addf %255, %258 : vector<8x4xf32>
    %260 = vector.extract_strided_slice %252 {offsets = [0, 8], sizes = [8, 4], strides = [1, 1]} : vector<8x64xf32> to vector<8x4xf32>
    %261 = arith.maximumf %257, %260 : vector<8x4xf32>
    %262 = vector.extract_strided_slice %253 {offsets = [0, 8], sizes = [8, 4], strides = [1, 1]} : vector<8x64xf32> to vector<8x4xf32>
    %263 = arith.addf %259, %262 : vector<8x4xf32>
    %264 = vector.extract_strided_slice %252 {offsets = [0, 12], sizes = [8, 4], strides = [1, 1]} : vector<8x64xf32> to vector<8x4xf32>
    %265 = arith.maximumf %261, %264 : vector<8x4xf32>
    %266 = vector.extract_strided_slice %253 {offsets = [0, 12], sizes = [8, 4], strides = [1, 1]} : vector<8x64xf32> to vector<8x4xf32>
    %267 = arith.addf %263, %266 : vector<8x4xf32>
    %cst_44 = arith.constant 6.250000e-02 : f32
    %268 = vector.broadcast %cst_44 : f32 to vector<8x4xf32>
    %269 = arith.mulf %267, %268 : vector<8x4xf32>
    %270 = arith.subf %265, %269 : vector<8x4xf32>
    %271 = arith.mulf %1, %270 : vector<8x4xf32>
    %272 = arith.addf %269, %271 : vector<8x4xf32>
    %c0_45 = arith.constant 0 : index
    %c48 = arith.constant 48 : index
    %273 = vector.load %arg6[%c0_45, %c48] : memref<8x64xf32, #tpu.memory_space<vmem>>, vector<8x4xf32>
    tpu.vector_store %arg6[%c0_45, %c48], %272 {strides = array<i32>} : memref<8x64xf32, #tpu.memory_space<vmem>>, vector<8x4xf32>,
    %274 = vector.extract_strided_slice %252 {offsets = [0, 16], sizes = [8, 4], strides = [1, 1]} : vector<8x64xf32> to vector<8x4xf32>
    %275 = vector.extract_strided_slice %253 {offsets = [0, 16], sizes = [8, 4], strides = [1, 1]} : vector<8x64xf32> to vector<8x4xf32>
    %276 = vector.extract_strided_slice %252 {offsets = [0, 20], sizes = [8, 4], strides = [1, 1]} : vector<8x64xf32> to vector<8x4xf32>
    %277 = arith.maximumf %274, %276 : vector<8x4xf32>
    %278 = vector.extract_strided_slice %253 {offsets = [0, 20], sizes = [8, 4], strides = [1, 1]} : vector<8x64xf32> to vector<8x4xf32>
    %279 = arith.addf %275, %278 : vector<8x4xf32>
    %280 = vector.extract_strided_slice %252 {offsets = [0, 24], sizes = [8, 4], strides = [1, 1]} : vector<8x64xf32> to vector<8x4xf32>
    %281 = arith.maximumf %277, %280 : vector<8x4xf32>
    %282 = vector.extract_strided_slice %253 {offsets = [0, 24], sizes = [8, 4], strides = [1, 1]} : vector<8x64xf32> to vector<8x4xf32>
    %283 = arith.addf %279, %282 : vector<8x4xf32>
    %284 = vector.extract_strided_slice %252 {offsets = [0, 28], sizes = [8, 4], strides = [1, 1]} : vector<8x64xf32> to vector<8x4xf32>
    %285 = arith.maximumf %281, %284 : vector<8x4xf32>
    %286 = vector.extract_strided_slice %253 {offsets = [0, 28], sizes = [8, 4], strides = [1, 1]} : vector<8x64xf32> to vector<8x4xf32>
    %287 = arith.addf %283, %286 : vector<8x4xf32>
    %cst_46 = arith.constant 6.250000e-02 : f32
    %288 = vector.broadcast %cst_46 : f32 to vector<8x4xf32>
    %289 = arith.mulf %287, %288 : vector<8x4xf32>
    %290 = arith.subf %285, %289 : vector<8x4xf32>
    %291 = arith.mulf %1, %290 : vector<8x4xf32>
    %292 = arith.addf %289, %291 : vector<8x4xf32>
    %c0_47 = arith.constant 0 : index
    %c52 = arith.constant 52 : index
    %293 = vector.load %arg6[%c0_47, %c52] : memref<8x64xf32, #tpu.memory_space<vmem>>, vector<8x4xf32>
    tpu.vector_store %arg6[%c0_47, %c52], %292 {strides = array<i32>} : memref<8x64xf32, #tpu.memory_space<vmem>>, vector<8x4xf32>,
    %294 = vector.extract_strided_slice %252 {offsets = [0, 32], sizes = [8, 4], strides = [1, 1]} : vector<8x64xf32> to vector<8x4xf32>
    %295 = vector.extract_strided_slice %253 {offsets = [0, 32], sizes = [8, 4], strides = [1, 1]} : vector<8x64xf32> to vector<8x4xf32>
    %296 = vector.extract_strided_slice %252 {offsets = [0, 36], sizes = [8, 4], strides = [1, 1]} : vector<8x64xf32> to vector<8x4xf32>
    %297 = arith.maximumf %294, %296 : vector<8x4xf32>
    %298 = vector.extract_strided_slice %253 {offsets = [0, 36], sizes = [8, 4], strides = [1, 1]} : vector<8x64xf32> to vector<8x4xf32>
    %299 = arith.addf %295, %298 : vector<8x4xf32>
    %300 = vector.extract_strided_slice %252 {offsets = [0, 40], sizes = [8, 4], strides = [1, 1]} : vector<8x64xf32> to vector<8x4xf32>
    %301 = arith.maximumf %297, %300 : vector<8x4xf32>
    %302 = vector.extract_strided_slice %253 {offsets = [0, 40], sizes = [8, 4], strides = [1, 1]} : vector<8x64xf32> to vector<8x4xf32>
    %303 = arith.addf %299, %302 : vector<8x4xf32>
    %304 = vector.extract_strided_slice %252 {offsets = [0, 44], sizes = [8, 4], strides = [1, 1]} : vector<8x64xf32> to vector<8x4xf32>
    %305 = arith.maximumf %301, %304 : vector<8x4xf32>
    %306 = vector.extract_strided_slice %253 {offsets = [0, 44], sizes = [8, 4], strides = [1, 1]} : vector<8x64xf32> to vector<8x4xf32>
    %307 = arith.addf %303, %306 : vector<8x4xf32>
    %cst_48 = arith.constant 6.250000e-02 : f32
    %308 = vector.broadcast %cst_48 : f32 to vector<8x4xf32>
    %309 = arith.mulf %307, %308 : vector<8x4xf32>
    %310 = arith.subf %305, %309 : vector<8x4xf32>
    %311 = arith.mulf %1, %310 : vector<8x4xf32>
    %312 = arith.addf %309, %311 : vector<8x4xf32>
    %c0_49 = arith.constant 0 : index
    %c56 = arith.constant 56 : index
    %313 = vector.load %arg6[%c0_49, %c56] : memref<8x64xf32, #tpu.memory_space<vmem>>, vector<8x4xf32>
    tpu.vector_store %arg6[%c0_49, %c56], %312 {strides = array<i32>} : memref<8x64xf32, #tpu.memory_space<vmem>>, vector<8x4xf32>,
    %314 = vector.extract_strided_slice %252 {offsets = [0, 48], sizes = [8, 4], strides = [1, 1]} : vector<8x64xf32> to vector<8x4xf32>
    %315 = vector.extract_strided_slice %253 {offsets = [0, 48], sizes = [8, 4], strides = [1, 1]} : vector<8x64xf32> to vector<8x4xf32>
    %316 = vector.extract_strided_slice %252 {offsets = [0, 52], sizes = [8, 4], strides = [1, 1]} : vector<8x64xf32> to vector<8x4xf32>
    %317 = arith.maximumf %314, %316 : vector<8x4xf32>
    %318 = vector.extract_strided_slice %253 {offsets = [0, 52], sizes = [8, 4], strides = [1, 1]} : vector<8x64xf32> to vector<8x4xf32>
    %319 = arith.addf %315, %318 : vector<8x4xf32>
    %320 = vector.extract_strided_slice %252 {offsets = [0, 56], sizes = [8, 4], strides = [1, 1]} : vector<8x64xf32> to vector<8x4xf32>
    %321 = arith.maximumf %317, %320 : vector<8x4xf32>
    %322 = vector.extract_strided_slice %253 {offsets = [0, 56], sizes = [8, 4], strides = [1, 1]} : vector<8x64xf32> to vector<8x4xf32>
    %323 = arith.addf %319, %322 : vector<8x4xf32>
    %324 = vector.extract_strided_slice %252 {offsets = [0, 60], sizes = [8, 4], strides = [1, 1]} : vector<8x64xf32> to vector<8x4xf32>
    %325 = arith.maximumf %321, %324 : vector<8x4xf32>
    %326 = vector.extract_strided_slice %253 {offsets = [0, 60], sizes = [8, 4], strides = [1, 1]} : vector<8x64xf32> to vector<8x4xf32>
    %327 = arith.addf %323, %326 : vector<8x4xf32>
    %cst_50 = arith.constant 6.250000e-02 : f32
    %328 = vector.broadcast %cst_50 : f32 to vector<8x4xf32>
    %329 = arith.mulf %327, %328 : vector<8x4xf32>
    %330 = arith.subf %325, %329 : vector<8x4xf32>
    %331 = arith.mulf %1, %330 : vector<8x4xf32>
    %332 = arith.addf %329, %331 : vector<8x4xf32>
    %c0_51 = arith.constant 0 : index
    %c60 = arith.constant 60 : index
    %333 = vector.load %arg6[%c0_51, %c60] : memref<8x64xf32, #tpu.memory_space<vmem>>, vector<8x4xf32>
    tpu.vector_store %arg6[%c0_51, %c60], %332 {strides = array<i32>} : memref<8x64xf32, #tpu.memory_space<vmem>>, vector<8x4xf32>,
    %c0_52 = arith.constant 0 : index
    %c0_53 = arith.constant 0 : index
    %334 = vector.load %arg6[%c0_52, %c0_53] : memref<8x64xf32, #tpu.memory_space<vmem>>, vector<8x64xf32>
    %c0_54 = arith.constant 0 : index
    %c0_55 = arith.constant 0 : index
    %335 = vector.load %arg3[%c0_54, %c0_55] : memref<64x128xf32, #tpu.memory_space<vmem>>, vector<64x128xf32>
    %cst_56 = arith.constant dense<0.000000e+00> : vector<8x128xf32>
    %336 = tpu.matmul %334, %335, %cst_56 {dimension_numbers = #tpu.dot_dimension_numbers<[1], [0], [0], [1], [0, 0, 1, 1], [], []>} : vector<8x64xf32>, vector<64x128xf32>, vector<8x128xf32> -> vector<8x128xf32>
    %c0_57 = arith.constant 0 : index
    %c0_58 = arith.constant 0 : index
    %337 = vector.load %arg4[%c0_57, %c0_58] : memref<1x128xf32, #tpu.memory_space<vmem>>, vector<1x128xf32>
    %338 = vector.broadcast %337 : vector<1x128xf32> to vector<8x128xf32>
    %339 = arith.addf %336, %338 : vector<8x128xf32>
    %c0_59 = arith.constant 0 : index
    %c0_60 = arith.constant 0 : index
    %340 = vector.load %arg5[%c0_59, %c0_60] : memref<8x128xf32, #tpu.memory_space<vmem>>, vector<8x128xf32>
    tpu.vector_store %arg5[%c0_59, %c0_60], %339 {strides = array<i32>} : memref<8x128xf32, #tpu.memory_space<vmem>>, vector<8x128xf32>,
    return
  }
  func.func @transform_0(%arg0: i32) -> i32 {
    %c0_i32 = arith.constant 0 : i32
    %c0_i32_0 = arith.constant 0 : i32
    return %c0_i32 : i32
  }
  func.func @transform_1(%arg0: i32) -> (i32, i32, i32) {
    %c0_i32 = arith.constant 0 : i32
    %c0_i32_0 = arith.constant 0 : i32
    %c0_i32_1 = arith.constant 0 : i32
    return %arg0, %c0_i32, %c0_i32_0 : i32, i32, i32
  }
  func.func @transform_2(%arg0: i32) -> (i32, i32) {
    %c0_i32 = arith.constant 0 : i32
    %c0_i32_0 = arith.constant 0 : i32
    %c0_i32_1 = arith.constant 0 : i32
    return %c0_i32, %c0_i32_0 : i32, i32
  }
  func.func @transform_3(%arg0: i32) -> (i32, i32) {
    %c0_i32 = arith.constant 0 : i32
    %c0_i32_0 = arith.constant 0 : i32
    %c0_i32_1 = arith.constant 0 : i32
    return %c0_i32, %c0_i32_0 : i32, i32
  }
  func.func @transform_4(%arg0: i32) -> (i32, i32) {
    %c0_i32 = arith.constant 0 : i32
    %c0_i32_0 = arith.constant 0 : i32
    return %arg0, %c0_i32 : i32, i32
  }
}

</mosaic_0001>

<llo_original>
// kernel: tpu_custom_call.1
$region0: #{tpu_custom_call.1}
  #allocation0 [shape = 'u32[]', space=smem, size = 0x4, offset = 0x4, fixed_abs, tag = 'smem constant byte address 0x4 - core index']
  #allocation1 [shape = 'u32[144,128]{1,0:T(1,128)}', space=vmem, size = 0x12000, scoped, tag = 'internal scratch']
  #allocation2 [shape = 'f32[8,64]{1,0:T(8,128)}', space=vmem, size = 0x1000, scoped, tag = 'scratch operand']
  #allocation3 [shape = 'f32[1]{0:T(128)S(6)}', space=smem, size = 0x200, scoped, tag = 'scoped memory for tpu_custom_call.1']
  %s0 = inlined_call_operand.<no memory space> [shape: f32[1], index: 0, kind: input, shape index: {}]
  %s1 = inlined_call_operand.hbm [shape: f32[16,16,64], index: 1, kind: input, shape index: {}]
  %s2 = inlined_call_operand.hbm [shape: f32[64,128], index: 2, kind: input, shape index: {}]
  %s3 = inlined_call_operand.vmem [shape: f32[1,128], index: 3, kind: input, shape index: {}]
  %s4 = inlined_call_operand.hbm [shape: f32[16,128], index: 4, kind: output, shape index: {}]
  %s5 = sld [smem:[#allocation0]]
  $region57: #{tpu_custom_call.1} parent=0
    _
  %s7 = ssub.s32 1, %s5
  %s8 = scalar_select 0, %s7, %s5
  %9 = sst [smem:[#allocation3]] %s0
  $region1: #{tpu_custom_call.1} parent=0
    #allocation4 [shape = 'u8[131072]{0}', space=vmem, size = 0x20000, scoped, tag = 'input window, operand 1']
    #allocation5 [shape = 's32[2]{0}', space=sflag, size = 0x8, scoped, tag = 'scoped memory for tpu_custom_call.1']
    #allocation6 [shape = 's32[2]{0}', space=sflag, size = 0x8, scoped, tag = 'scoped memory for tpu_custom_call.1']
    #allocation7 [shape = 'u8[32768]{0}', space=vmem, size = 0x8000, scoped, tag = 'input window, operand 2, single buffered']
    #allocation8 [shape = 's32[1]{0}', space=sflag, size = 0x4, scoped, tag = 'scoped memory for tpu_custom_call.1']
    #allocation9 [shape = 'u8[8192]{0}', space=vmem, size = 0x2000, scoped, tag = 'output window, operand 0']
    %10 = vsyncpa [#allocation5], 0
    %s11 = scalar_lea.sflag [#allocation5], 1
    %12 = vsyncpa %s11, 0
    %13 = vsyncpa [#allocation8], 0
    %14 = vsyncpa [#allocation6], 0
    %s15 = scalar_lea.sflag [#allocation6], 1
    %16 = vsyncpa %s15, 0
    loop: start=0, step=1, limit=4
    $region2: #{tpu_custom_call.1} parent=1 // loop_pre_header
      _
    $region3: #{tpu_custom_call.1} parent=1 // loop_header
      %s18 = sphi 0, %s22
      %p19 = scmp.ge.s32.totalorder %s18, 4
      %s26 = sphi 0, %s26
      %s28 = sphi 0, %s26
      %s29 = sphi 0, %s28
      %s43 = sphi 0, %s29
      %s49 = sphi 0, %s51
      %s52 = sphi 0, %s49
      %s53 = sphi 0, %s52
      %s69 = sphi 0, %s53
      %s73 = sphi 0, %s73
      %s75 = sphi 0, %s73
      %s76 = sphi 0, %s75
      %s90 = sphi 0, %s76
      %s94 = sphi 0, %s94
      %s96 = sphi 0, %s94
      %s97 = sphi 0, %s96
      %s111 = sphi 0, %s97
      %s117 = sphi 0, %s119
      %s120 = sphi 0, %s117
      %s121 = sphi 0, %s120
      %s137 = sphi 0, %s121
    $region4: #{tpu_custom_call.1} parent=1 // loop_header_branch
      %21 = sbr.rel (%p19) target = $region8
    $region5: #{tpu_custom_call.1} parent=1 // loop_body
      %s23 = ssub.s32 %s18, 1
      %s24 = ssub.s32 %s18, 2
      %s25 = sadd.s32 %s18, 1
      %s27 = sadd.s32 %s26, 1
      %p30 = scmp.eq.s32.totalorder %s18, 1
      %p31 = scmp.ne.s32.totalorder %s26, %s28
      %p32 = scmp.eq.s32.totalorder %s18, 0
      %p33 = por %p31, %p32
      %p34 = scmp.ne.s32.totalorder %s26, %s28
      %p35 = scmp.eq.s32.totalorder %s23, 1
      %p36 = por %p34, %p35
      %p37 = scmp.ne.s32.totalorder %s28, %s29
      %p38 = scmp.eq.s32.totalorder %s23, 0
      %p39 = por %p37, %p38
      %p40 = scmp.ne.s32.totalorder %s28, %s29
      %p41 = scmp.eq.s32.totalorder %s24, 1
      %p42 = por %p40, %p41
      %p44 = scmp.ne.s32.totalorder %s29, %s43
      %p45 = scmp.eq.s32.totalorder %s24, 0
      %p46 = por %p44, %p45
      %s47 = ssub.s32 %s18, %s25
      %p48 = scmp.eq.s32.totalorder %s47, 0
      %s50 = sadd.s32 %s49, 1
      %s51 = scalar_select %p48, %s49, %s50
      %p54 = pneg %p48
      %p55 = scmp.eq.s32.totalorder %s18, 1
      %p56 = por %p54, %p55
      %p57 = scmp.ne.s32.totalorder %s49, %s52
      %p58 = scmp.eq.s32.totalorder %s18, 0
      %p59 = por %p57, %p58
      %p60 = scmp.ne.s32.totalorder %s49, %s52
      %p61 = scmp.eq.s32.totalorder %s23, 1
      %p62 = por %p60, %p61
      %p63 = scmp.ne.s32.totalorder %s52, %s53
      %p64 = scmp.eq.s32.totalorder %s23, 0
      %p65 = por %p63, %p64
      %p66 = scmp.ne.s32.totalorder %s52, %s53
      %p67 = scmp.eq.s32.totalorder %s24, 1
      %p68 = por %p66, %p67
      %p70 = scmp.ne.s32.totalorder %s53, %s69
      %p71 = scmp.eq.s32.totalorder %s24, 0
      %p72 = por %p70, %p71
      %s74 = sadd.s32 %s73, 1
      %p77 = scmp.eq.s32.totalorder %s18, 1
      %p78 = scmp.ne.s32.totalorder %s73, %s75
      %p79 = scmp.eq.s32.totalorder %s18, 0
      %p80 = por %p78, %p79
      %p81 = scmp.ne.s32.totalorder %s73, %s75
      %p82 = scmp.eq.s32.totalorder %s23, 1
      %p83 = por %p81, %p82
      %p84 = scmp.ne.s32.totalorder %s75, %s76
      %p85 = scmp.eq.s32.totalorder %s23, 0
      %p86 = por %p84, %p85
      %p87 = scmp.ne.s32.totalorder %s75, %s76
      %p88 = scmp.eq.s32.totalorder %s24, 1
      %p89 = por %p87, %p88
      %p91 = scmp.ne.s32.totalorder %s76, %s90
      %p92 = scmp.eq.s32.totalorder %s24, 0
      %p93 = por %p91, %p92
      %s95 = sadd.s32 %s94, 1
      %p98 = scmp.eq.s32.totalorder %s18, 1
      %p99 = scmp.ne.s32.totalorder %s94, %s96
      %p100 = scmp.eq.s32.totalorder %s18, 0
      %p101 = por %p99, %p100
      %p102 = scmp.ne.s32.totalorder %s94, %s96
      %p103 = scmp.eq.s32.totalorder %s23, 1
      %p104 = por %p102, %p103
      %p105 = scmp.ne.s32.totalorder %s96, %s97
      %p106 = scmp.eq.s32.totalorder %s23, 0
      %p107 = por %p105, %p106
      %p108 = scmp.ne.s32.totalorder %s96, %s97
      %p109 = scmp.eq.s32.totalorder %s24, 1
      %p110 = por %p108, %p109
      %p112 = scmp.ne.s32.totalorder %s97, %s111
      %p113 = scmp.eq.s32.totalorder %s24, 0
      %p114 = por %p112, %p113
      %s115 = ssub.s32 %s18, %s25
      %p116 = scmp.eq.s32.totalorder %s115, 0
      %s118 = sadd.s32 %s117, 1
      %s119 = scalar_select %p116, %s117, %s118
      %p122 = pneg %p116
      %p123 = scmp.eq.s32.totalorder %s18, 1
      %p124 = por %p122, %p123
      %p125 = scmp.ne.s32.totalorder %s117, %s120
      %p126 = scmp.eq.s32.totalorder %s18, 0
      %p127 = por %p125, %p126
      %p128 = scmp.ne.s32.totalorder %s117, %s120
      %p129 = scmp.eq.s32.totalorder %s23, 1
      %p130 = por %p128, %p129
      %p131 = scmp.ne.s32.totalorder %s120, %s121
      %p132 = scmp.eq.s32.totalorder %s23, 0
      %p133 = por %p131, %p132
      %p134 = scmp.ne.s32.totalorder %s120, %s121
      %p135 = scmp.eq.s32.totalorder %s24, 1
      %p136 = por %p134, %p135
      %p138 = scmp.ne.s32.totalorder %s121, %s137
      %p139 = scmp.eq.s32.totalorder %s24, 0
      %p140 = por %p138, %p139
      %p141 = scmp.le.s32.totalorder 1, %s18
      %p142 = scmp.lt.s32.totalorder %s18, 3
      %p143 = pnand %p141, %p142
      %p144 = pneg %p143
      // Predicated region
      $region9: #{tpu_custom_call.1} parent=5 // pred_check
        _
      $region10: #{tpu_custom_call.1} parent=5 // pred_check_branch
        %146 = sbr.rel (%p143) target = $region12
      $region11: #{tpu_custom_call.1} parent=5 // pred_region
        %s147 = ssub.s32 %s18, 1
        // Predicated region
        $region13: #{tpu_custom_call.1} parent=11 // pred_check
          %p148 = pneg %p39
        $region14: #{tpu_custom_call.1} parent=11 // pred_check_branch
          %150 = sbr.rel (%p148) target = $region16
        $region15: #{tpu_custom_call.1} parent=11 // pred_region
          _
        $region16: #{tpu_custom_call.1} parent=11 // pred_fallthru
          _
        // Predicated region
        $region17: #{tpu_custom_call.1} parent=11 // pred_check
          %p151 = pneg %p86
        $region18: #{tpu_custom_call.1} parent=11 // pred_check_branch
          %153 = sbr.rel (%p151) target = $region20
        $region19: #{tpu_custom_call.1} parent=11 // pred_region
          %s155 = ssub.s32 1024, 1024
          %156 = vsyncadd [#allocation8], %s155
          %s157 = sshll.u32 [#allocation7], 4
          %s158 = int_to_ptr.vmem [resolvable:$true] %s157
          %163 = dma.hbm_to_vmem [thread:$0]  %s2, 1024, %s158, [#allocation8], 128, 128, 8
        $region20: #{tpu_custom_call.1} parent=11 // pred_fallthru
          _
        // Predicated region
        $region21: #{tpu_custom_call.1} parent=11 // pred_check
          %p164 = pneg %p107
        $region22: #{tpu_custom_call.1} parent=11 // pred_check_branch
          %166 = sbr.rel (%p164) target = $region24
        $region23: #{tpu_custom_call.1} parent=11 // pred_region
          _
        $region24: #{tpu_custom_call.1} parent=11 // pred_fallthru
          _
      $region12: #{tpu_custom_call.1} parent=5 // pred_fallthru
        _
      %p167 = scmp.lt.s32.totalorder %s18, 2
      // Predicated region
      $region25: #{tpu_custom_call.1} parent=5 // pred_check
        %p168 = pneg %p167
      $region26: #{tpu_custom_call.1} parent=5 // pred_check_branch
        %170 = sbr.rel (%p168) target = $region28
      $region27: #{tpu_custom_call.1} parent=5 // pred_region
        // Predicated region
        $region29: #{tpu_custom_call.1} parent=27 // pred_check
          %p171 = pneg %p59
        $region30: #{tpu_custom_call.1} parent=27 // pred_check_branch
          %173 = sbr.rel (%p171) target = $region32
        $region31: #{tpu_custom_call.1} parent=27 // pred_region
          %s174 = sand.u32 %s49, 1
          %s175 = scalar_lea.sflag [#allocation5], %s174
          %s176 = sand.u32 %s49, 1
          %s177 = smul.addr %s176, 128
          %s178 = scalar_lea.vmem [#allocation4], %s177
          %s179 = smul.u32 8, %s18
          %s181 = ssub.s32 2048, 2048
          %182 = vsyncadd %s175, %s181
          %s183 = smul.addr %s179, 2
          %s184 = smul.addr %s183, 128
          %s185 = scalar_lea.hbm %s1, %s184
          %s186 = sshll.u32 %s178, 4
          %s187 = int_to_ptr.vmem [resolvable:$true] %s186
          %192 = dma.hbm_to_vmem [thread:$0]  %s185, 2048, %s187, %s175, 128, 128, 8
        $region32: #{tpu_custom_call.1} parent=27 // pred_fallthru
          _
      $region28: #{tpu_custom_call.1} parent=5 // pred_fallthru
        _
      %p193 = scmp.le.s32.totalorder 1, %s18
      %p194 = scmp.lt.s32.totalorder %s18, 3
      %p195 = pnand %p193, %p194
      %p196 = pneg %p195
      // Predicated region
      $region33: #{tpu_custom_call.1} parent=5 // pred_check
        _
      $region34: #{tpu_custom_call.1} parent=5 // pred_check_branch
        %198 = sbr.rel (%p195) target = $region36
      $region35: #{tpu_custom_call.1} parent=5 // pred_region
        %s199 = ssub.s32 %s18, 1
        %s200 = sand.u32 %s52, 1
        %s201 = scalar_lea.sflag [#allocation5], %s200
        %s202 = sand.u32 %s52, 1
        %s203 = smul.addr %s202, 128
        %s204 = scalar_lea.vmem [#allocation4], %s203
        // Predicated region
        $region37: #{tpu_custom_call.1} parent=35 // pred_check
          %p205 = pneg %p65
        $region38: #{tpu_custom_call.1} parent=35 // pred_check_branch
          %207 = sbr.rel (%p205) target = $region40
        $region39: #{tpu_custom_call.1} parent=35 // pred_region
          %208 = dma.done %s201, 2048
        $region40: #{tpu_custom_call.1} parent=35 // pred_fallthru
          _
        // Predicated region
        $region41: #{tpu_custom_call.1} parent=35 // pred_check
          %p209 = pneg %p86
        $region42: #{tpu_custom_call.1} parent=35 // pred_check_branch
          %211 = sbr.rel (%p209) target = $region44
        $region43: #{tpu_custom_call.1} parent=35 // pred_region
          %212 = dma.done [#allocation8], 1024
        $region44: #{tpu_custom_call.1} parent=35 // pred_fallthru
          _
        %p213 = pneg %p39
        %p214 = pneg %p36
        %s215 = sand.u32 %s52, 1
        %s216 = scalar_lea.sflag [#allocation5], %s215
        %s217 = sand.u32 %s52, 1
        %s218 = smul.addr %s217, 128
        %s219 = scalar_lea.vmem [#allocation4], %s218
        %p220 = pneg %p65
        %p221 = pneg %p62
        %p222 = pneg %p86
        %p223 = pneg %p83
        %p224 = pneg %p107
        %p225 = pneg %p104
        %p226 = pneg %p133
        %p227 = pneg %p130
        %s228 = sand.u32 %s120, 1
        %s229 = scalar_lea.sflag [#allocation6], %s228
        %s230 = sand.u32 %s120, 1
        %s231 = smul.addr %s230, 8
        %s232 = scalar_lea.vmem [#allocation9], %s231
        %s233 = smul.u32 8, %s23
        %s234 = sld [smem:[#allocation3]]
        %v235 = vstv %s234
        %v236 = vld [vmem:[%s204] sm:$0xf]
        %v237 = vld [vmem:[%s204 + $0x10] sm:$0xf]
        %v238 = vld [vmem:[%s204 + $0x20] sm:$0xf]
        %v239 = vld [vmem:[%s204 + $0x30] sm:$0xf]
        %v240 = vld [vmem:[%s204 + $0x40] sm:$0xf]
        %v241 = vld [vmem:[%s204 + $0x50] sm:$0xf]
        %v242 = vld [vmem:[%s204 + $0x60] sm:$0xf]
        %v243 = vld [vmem:[%s204 + $0x70] sm:$0xf]
        %vm244 = vcmask 519168
        %v245 = vsel %vm244, %v236, -inf
        %v246 = vrot.slane %v245, 4
        %v247 = vmax.f32 %v245, %v246
        %v248 = vrot.slane %v247, 2
        %v249 = vmax.f32 %v247, %v248
        %v250 = vrot.slane %v249, 1
        %v251 = vmax.f32 %v249, %v250
        %v252 = vsel %vm244, %v237, -inf
        %v253 = vrot.slane %v252, 4
        %v254 = vmax.f32 %v252, %v253
        %v255 = vrot.slane %v254, 2
        %v256 = vmax.f32 %v254, %v255
        %v257 = vrot.slane %v256, 1
        %v258 = vmax.f32 %v256, %v257
        %v259 = vsel %vm244, %v238, -inf
        %v260 = vrot.slane %v259, 4
        %v261 = vmax.f32 %v259, %v260
        %v262 = vrot.slane %v261, 2
        %v263 = vmax.f32 %v261, %v262
        %v264 = vrot.slane %v263, 1
        %v265 = vmax.f32 %v263, %v264
        %v266 = vsel %vm244, %v239, -inf
        %v267 = vrot.slane %v266, 4
        %v268 = vmax.f32 %v266, %v267
        %v269 = vrot.slane %v268, 2
        %v270 = vmax.f32 %v268, %v269
        %v271 = vrot.slane %v270, 1
        %v272 = vmax.f32 %v270, %v271
        %v273 = vsel %vm244, %v240, -inf
        %v274 = vrot.slane %v273, 4
        %v275 = vmax.f32 %v273, %v274
        %v276 = vrot.slane %v275, 2
        %v277 = vmax.f32 %v275, %v276
        %v278 = vrot.slane %v277, 1
        %v279 = vmax.f32 %v277, %v278
        %v280 = vsel %vm244, %v241, -inf
        %v281 = vrot.slane %v280, 4
        %v282 = vmax.f32 %v280, %v281
        %v283 = vrot.slane %v282, 2
        %v284 = vmax.f32 %v282, %v283
        %v285 = vrot.slane %v284, 1
        %v286 = vmax.f32 %v284, %v285
        %v287 = vsel %vm244, %v242, -inf
        %v288 = vrot.slane %v287, 4
        %v289 = vmax.f32 %v287, %v288
        %v290 = vrot.slane %v289, 2
        %v291 = vmax.f32 %v289, %v290
        %v292 = vrot.slane %v291, 1
        %v293 = vmax.f32 %v291, %v292
        %v294 = vsel %vm244, %v243, -inf
        %v295 = vrot.slane %v294, 4
        %v296 = vmax.f32 %v294, %v295
        %v297 = vrot.slane %v296, 2
        %v298 = vmax.f32 %v296, %v297
        %v299 = vrot.slane %v298, 1
        %v300 = vmax.f32 %v298, %v299
        %v301 = vsel %vm244, %v236, 0.0
        %v302 = vrot.slane %v301, 4
        %v303 = vadd.f32 %v301, %v302
        %v304 = vrot.slane %v303, 2
        %v305 = vadd.f32 %v303, %v304
        %v306 = vrot.slane %v305, 1
        %v307 = vadd.f32 %v305, %v306
        %v308 = vsel %vm244, %v237, 0.0
        %v309 = vrot.slane %v308, 4
        %v310 = vadd.f32 %v308, %v309
        %v311 = vrot.slane %v310, 2
        %v312 = vadd.f32 %v310, %v311
        %v313 = vrot.slane %v312, 1
        %v314 = vadd.f32 %v312, %v313
        %v315 = vsel %vm244, %v238, 0.0
        %v316 = vrot.slane %v315, 4
        %v317 = vadd.f32 %v315, %v316
        %v318 = vrot.slane %v317, 2
        %v319 = vadd.f32 %v317, %v318
        %v320 = vrot.slane %v319, 1
        %v321 = vadd.f32 %v319, %v320
        %v322 = vsel %vm244, %v239, 0.0
        %v323 = vrot.slane %v322, 4
        %v324 = vadd.f32 %v322, %v323
        %v325 = vrot.slane %v324, 2
        %v326 = vadd.f32 %v324, %v325
        %v327 = vrot.slane %v326, 1
        %v328 = vadd.f32 %v326, %v327
        %v329 = vsel %vm244, %v240, 0.0
        %v330 = vrot.slane %v329, 4
        %v331 = vadd.f32 %v329, %v330
        %v332 = vrot.slane %v331, 2
        %v333 = vadd.f32 %v331, %v332
        %v334 = vrot.slane %v333, 1
        %v335 = vadd.f32 %v333, %v334
        %v336 = vsel %vm244, %v241, 0.0
        %v337 = vrot.slane %v336, 4
        %v338 = vadd.f32 %v336, %v337
        %v339 = vrot.slane %v338, 2
        %v340 = vadd.f32 %v338, %v339
        %v341 = vrot.slane %v340, 1
        %v342 = vadd.f32 %v340, %v341
        %v343 = vsel %vm244, %v242, 0.0
        %v344 = vrot.slane %v343, 4
        %v345 = vadd.f32 %v343, %v344
        %v346 = vrot.slane %v345, 2
        %v347 = vadd.f32 %v345, %v346
        %v348 = vrot.slane %v347, 1
        %v349 = vadd.f32 %v347, %v348
        %v350 = vsel %vm244, %v243, 0.0
        %v351 = vrot.slane %v350, 4
        %v352 = vadd.f32 %v350, %v351
        %v353 = vrot.slane %v352, 2
        %v354 = vadd.f32 %v352, %v353
        %v355 = vrot.slane %v354, 1
        %v356 = vadd.f32 %v354, %v355
        %365 = vrot.lane.b32.xlu0 %v251, 124
        %v366 = vpop.permute.xlu0 %365
        %367 = vrot.lane.b32.xlu0 %v258, 124
        %v368 = vpop.permute.xlu0 %367
        %369 = vrot.lane.b32.xlu0 %v265, 124
        %v370 = vpop.permute.xlu0 %369
        %371 = vrot.lane.b32.xlu0 %v272, 124
        %v372 = vpop.permute.xlu0 %371
        %373 = vrot.lane.b32.xlu0 %v279, 124
        %v374 = vpop.permute.xlu0 %373
        %375 = vrot.lane.b32.xlu0 %v286, 124
        %v376 = vpop.permute.xlu0 %375
        %377 = vrot.lane.b32.xlu0 %v293, 124
        %v378 = vpop.permute.xlu0 %377
        %379 = vrot.lane.b32.xlu0 %v300, 124
        %v380 = vpop.permute.xlu0 %379
        %v389 = vmax.f32 %v251, %v366
        %v390 = vmax.f32 %v258, %v368
        %v391 = vmax.f32 %v265, %v370
        %v392 = vmax.f32 %v272, %v372
        %v393 = vmax.f32 %v279, %v374
        %v394 = vmax.f32 %v286, %v376
        %v395 = vmax.f32 %v293, %v378
        %v396 = vmax.f32 %v300, %v380
        %405 = vrot.lane.b32.xlu0 %v307, 124
        %v406 = vpop.permute.xlu0 %405
        %407 = vrot.lane.b32.xlu0 %v314, 124
        %v408 = vpop.permute.xlu0 %407
        %409 = vrot.lane.b32.xlu0 %v321, 124
        %v410 = vpop.permute.xlu0 %409
        %411 = vrot.lane.b32.xlu0 %v328, 124
        %v412 = vpop.permute.xlu0 %411
        %413 = vrot.lane.b32.xlu0 %v335, 124
        %v414 = vpop.permute.xlu0 %413
        %415 = vrot.lane.b32.xlu0 %v342, 124
        %v416 = vpop.permute.xlu0 %415
        %417 = vrot.lane.b32.xlu0 %v349, 124
        %v418 = vpop.permute.xlu0 %417
        %419 = vrot.lane.b32.xlu0 %v356, 124
        %v420 = vpop.permute.xlu0 %419
        %v429 = vadd.f32 %v307, %v406
        %v430 = vadd.f32 %v314, %v408
        %v431 = vadd.f32 %v321, %v410
        %v432 = vadd.f32 %v328, %v412
        %v433 = vadd.f32 %v335, %v414
        %v434 = vadd.f32 %v342, %v416
        %v435 = vadd.f32 %v349, %v418
        %v436 = vadd.f32 %v356, %v420
        %437 = vrot.lane.b32.xlu0 %v251, 120
        %v438 = vpop.permute.xlu0 %437
        %439 = vrot.lane.b32.xlu0 %v258, 120
        %v440 = vpop.permute.xlu0 %439
        %441 = vrot.lane.b32.xlu0 %v265, 120
        %v442 = vpop.permute.xlu0 %441
        %443 = vrot.lane.b32.xlu0 %v272, 120
        %v444 = vpop.permute.xlu0 %443
        %445 = vrot.lane.b32.xlu0 %v279, 120
        %v446 = vpop.permute.xlu0 %445
        %447 = vrot.lane.b32.xlu0 %v286, 120
        %v448 = vpop.permute.xlu0 %447
        %449 = vrot.lane.b32.xlu0 %v293, 120
        %v450 = vpop.permute.xlu0 %449
        %451 = vrot.lane.b32.xlu0 %v300, 120
        %v452 = vpop.permute.xlu0 %451
        %v461 = vmax.f32 %v389, %v438
        %v462 = vmax.f32 %v390, %v440
        %v463 = vmax.f32 %v391, %v442
        %v464 = vmax.f32 %v392, %v444
        %v465 = vmax.f32 %v393, %v446
        %v466 = vmax.f32 %v394, %v448
        %v467 = vmax.f32 %v395, %v450
        %v468 = vmax.f32 %v396, %v452
        %469 = vrot.lane.b32.xlu0 %v307, 120
        %v470 = vpop.permute.xlu0 %469
        %471 = vrot.lane.b32.xlu0 %v314, 120
        %v472 = vpop.permute.xlu0 %471
        %473 = vrot.lane.b32.xlu0 %v321, 120
        %v474 = vpop.permute.xlu0 %473
        %475 = vrot.lane.b32.xlu0 %v328, 120
        %v476 = vpop.permute.xlu0 %475
        %477 = vrot.lane.b32.xlu0 %v335, 120
        %v478 = vpop.permute.xlu0 %477
        %479 = vrot.lane.b32.xlu0 %v342, 120
        %v480 = vpop.permute.xlu0 %479
        %481 = vrot.lane.b32.xlu0 %v349, 120
        %v482 = vpop.permute.xlu0 %481
        %483 = vrot.lane.b32.xlu0 %v356, 120
        %v484 = vpop.permute.xlu0 %483
        %v493 = vadd.f32 %v429, %v470
        %v494 = vadd.f32 %v430, %v472
        %v495 = vadd.f32 %v431, %v474
        %v496 = vadd.f32 %v432, %v476
        %v497 = vadd.f32 %v433, %v478
        %v498 = vadd.f32 %v434, %v480
        %v499 = vadd.f32 %v435, %v482
        %v500 = vadd.f32 %v436, %v484
        %501 = vrot.lane.b32.xlu0 %v251, 116
        %v502 = vpop.permute.xlu0 %501
        %503 = vrot.lane.b32.xlu0 %v258, 116
        %v504 = vpop.permute.xlu0 %503
        %505 = vrot.lane.b32.xlu0 %v265, 116
        %v506 = vpop.permute.xlu0 %505
        %507 = vrot.lane.b32.xlu0 %v272, 116
        %v508 = vpop.permute.xlu0 %507
        %509 = vrot.lane.b32.xlu0 %v279, 116
        %v510 = vpop.permute.xlu0 %509
        %511 = vrot.lane.b32.xlu0 %v286, 116
        %v512 = vpop.permute.xlu0 %511
        %513 = vrot.lane.b32.xlu0 %v293, 116
        %v514 = vpop.permute.xlu0 %513
        %515 = vrot.lane.b32.xlu0 %v300, 116
        %v516 = vpop.permute.xlu0 %515
        %v525 = vmax.f32 %v461, %v502
        %v526 = vmax.f32 %v462, %v504
        %v527 = vmax.f32 %v463, %v506
        %v528 = vmax.f32 %v464, %v508
        %v529 = vmax.f32 %v465, %v510
        %v530 = vmax.f32 %v466, %v512
        %v531 = vmax.f32 %v467, %v514
        %v532 = vmax.f32 %v468, %v516
        %533 = vrot.lane.b32.xlu0 %v307, 116
        %v534 = vpop.permute.xlu0 %533
        %535 = vrot.lane.b32.xlu0 %v314, 116
        %v536 = vpop.permute.xlu0 %535
        %537 = vrot.lane.b32.xlu0 %v321, 116
        %v538 = vpop.permute.xlu0 %537
        %539 = vrot.lane.b32.xlu0 %v328, 116
        %v540 = vpop.permute.xlu0 %539
        %541 = vrot.lane.b32.xlu0 %v335, 116
        %v542 = vpop.permute.xlu0 %541
        %543 = vrot.lane.b32.xlu0 %v342, 116
        %v544 = vpop.permute.xlu0 %543
        %545 = vrot.lane.b32.xlu0 %v349, 116
        %v546 = vpop.permute.xlu0 %545
        %547 = vrot.lane.b32.xlu0 %v356, 116
        %v548 = vpop.permute.xlu0 %547
        %v557 = vadd.f32 %v493, %v534
        %v558 = vadd.f32 %v494, %v536
        %v559 = vadd.f32 %v495, %v538
        %v560 = vadd.f32 %v496, %v540
        %v561 = vadd.f32 %v497, %v542
        %v562 = vadd.f32 %v498, %v544
        %v563 = vadd.f32 %v499, %v546
        %v564 = vadd.f32 %v500, %v548
        %v565 = vmul.f32 %v557, 0.0625
        %v566 = vmul.f32 %v558, 0.0625
        %v567 = vmul.f32 %v559, 0.0625
        %v568 = vmul.f32 %v560, 0.0625
        %v569 = vmul.f32 %v561, 0.0625
        %v570 = vmul.f32 %v562, 0.0625
        %v571 = vmul.f32 %v563, 0.0625
        %v572 = vmul.f32 %v564, 0.0625
        %v573 = vsub.f32 %v525, %v565
        %v574 = vsub.f32 %v526, %v566
        %v575 = vsub.f32 %v527, %v567
        %v576 = vsub.f32 %v528, %v568
        %v577 = vsub.f32 %v529, %v569
        %v578 = vsub.f32 %v530, %v570
        %v579 = vsub.f32 %v531, %v571
        %v580 = vsub.f32 %v532, %v572
        %v581 = vmul.f32 %v235, %v573
        %v582 = vmul.f32 %v235, %v574
        %v583 = vmul.f32 %v235, %v575
        %v584 = vmul.f32 %v235, %v576
        %v585 = vmul.f32 %v235, %v577
        %v586 = vmul.f32 %v235, %v578
        %v587 = vmul.f32 %v235, %v579
        %v588 = vmul.f32 %v235, %v580
        %v589 = vadd.f32 %v565, %v581
        %v590 = vadd.f32 %v566, %v582
        %v591 = vadd.f32 %v567, %v583
        %v592 = vadd.f32 %v568, %v584
        %v593 = vadd.f32 %v569, %v585
        %v594 = vadd.f32 %v570, %v586
        %v595 = vadd.f32 %v571, %v587
        %v596 = vadd.f32 %v572, %v588
        %v605 = vrot.slane %v590, 7
        %vm606 = vcmask 1041409
        %v607 = vsel %vm606, %v605, %v589
        %v608 = vrot.slane %v591, 6
        %vm609 = vcmask 1042434
        %v610 = vsel %vm609, %v608, %v607
        %v611 = vrot.slane %v592, 5
        %vm612 = vcmask 1043459
        %v613 = vsel %vm612, %v611, %v610
        %v614 = vrot.slane %v593, 4
        %vm615 = vcmask 1044484
        %v616 = vsel %vm615, %v614, %v613
        %v617 = vrot.slane %v594, 3
        %vm618 = vcmask 1045509
        %v619 = vsel %vm618, %v617, %v616
        %v620 = vrot.slane %v595, 2
        %vm621 = vcmask 1046534
        %v622 = vsel %vm621, %v620, %v619
        %v623 = vrot.slane %v596, 1
        %vm624 = vcmask 1047559
        %v625 = vsel %vm624, %v623, %v622
        %vm627 = vcmask 31744
        %628 = vst.msk [vmem:[#allocation2] sm:$0xff] %vm627, %v625
        %629 = vrot.lane.b32.xlu0 %v625, 116
        %v630 = vpop.permute.xlu0 %629
        %vm632 = vcmask 64544
        %633 = vst.msk [vmem:[#allocation2] sm:$0xff] %vm632, %v630
        %634 = vrot.lane.b32.xlu0 %v625, 104
        %v635 = vpop.permute.xlu0 %634
        %vm637 = vcmask 97344
        %638 = vst.msk [vmem:[#allocation2] sm:$0xff] %vm637, %v635
        %639 = vrot.lane.b32.xlu0 %v625, 92
        %v640 = vpop.permute.xlu0 %639
        %vm642 = vcmask 130144
        %643 = vst.msk [vmem:[#allocation2] sm:$0xff] %vm642, %v640
        %v644 = vld [vmem:[%s204 + $0x4] sm:$0xf]
        %v645 = vld [vmem:[%s204 + $0x14] sm:$0xf]
        %v646 = vld [vmem:[%s204 + $0x24] sm:$0xf]
        %v647 = vld [vmem:[%s204 + $0x34] sm:$0xf]
        %v648 = vld [vmem:[%s204 + $0x44] sm:$0xf]
        %v649 = vld [vmem:[%s204 + $0x54] sm:$0xf]
        %v650 = vld [vmem:[%s204 + $0x64] sm:$0xf]
        %v651 = vld [vmem:[%s204 + $0x74] sm:$0xf]
        %v652 = vsel %vm244, %v644, -inf
        %v653 = vrot.slane %v652, 4
        %v654 = vmax.f32 %v652, %v653
        %v655 = vrot.slane %v654, 2
        %v656 = vmax.f32 %v654, %v655
        %v657 = vrot.slane %v656, 1
        %v658 = vmax.f32 %v656, %v657
        %v659 = vsel %vm244, %v645, -inf
        %v660 = vrot.slane %v659, 4
        %v661 = vmax.f32 %v659, %v660
        %v662 = vrot.slane %v661, 2
        %v663 = vmax.f32 %v661, %v662
        %v664 = vrot.slane %v663, 1
        %v665 = vmax.f32 %v663, %v664
        %v666 = vsel %vm244, %v646, -inf
        %v667 = vrot.slane %v666, 4
        %v668 = vmax.f32 %v666, %v667
        %v669 = vrot.slane %v668, 2
        %v670 = vmax.f32 %v668, %v669
        %v671 = vrot.slane %v670, 1
        %v672 = vmax.f32 %v670, %v671
        %v673 = vsel %vm244, %v647, -inf
        %v674 = vrot.slane %v673, 4
        %v675 = vmax.f32 %v673, %v674
        %v676 = vrot.slane %v675, 2
        %v677 = vmax.f32 %v675, %v676
        %v678 = vrot.slane %v677, 1
        %v679 = vmax.f32 %v677, %v678
        %v680 = vsel %vm244, %v648, -inf
        %v681 = vrot.slane %v680, 4
        %v682 = vmax.f32 %v680, %v681
        %v683 = vrot.slane %v682, 2
        %v684 = vmax.f32 %v682, %v683
        %v685 = vrot.slane %v684, 1
        %v686 = vmax.f32 %v684, %v685
        %v687 = vsel %vm244, %v649, -inf
        %v688 = vrot.slane %v687, 4
        %v689 = vmax.f32 %v687, %v688
        %v690 = vrot.slane %v689, 2
        %v691 = vmax.f32 %v689, %v690
        %v692 = vrot.slane %v691, 1
        %v693 = vmax.f32 %v691, %v692
        %v694 = vsel %vm244, %v650, -inf
        %v695 = vrot.slane %v694, 4
        %v696 = vmax.f32 %v694, %v695
        %v697 = vrot.slane %v696, 2
        %v698 = vmax.f32 %v696, %v697
        %v699 = vrot.slane %v698, 1
        %v700 = vmax.f32 %v698, %v699
        %v701 = vsel %vm244, %v651, -inf
        %v702 = vrot.slane %v701, 4
        %v703 = vmax.f32 %v701, %v702
        %v704 = vrot.slane %v703, 2
        %v705 = vmax.f32 %v703, %v704
        %v706 = vrot.slane %v705, 1
        %v707 = vmax.f32 %v705, %v706
        %v708 = vsel %vm244, %v644, 0.0
        %v709 = vrot.slane %v708, 4
        %v710 = vadd.f32 %v708, %v709
        %v711 = vrot.slane %v710, 2
        %v712 = vadd.f32 %v710, %v711
        %v713 = vrot.slane %v712, 1
        %v714 = vadd.f32 %v712, %v713
        %v715 = vsel %vm244, %v645, 0.0
        %v716 = vrot.slane %v715, 4
        %v717 = vadd.f32 %v715, %v716
        %v718 = vrot.slane %v717, 2
        %v719 = vadd.f32 %v717, %v718
        %v720 = vrot.slane %v719, 1
        %v721 = vadd.f32 %v719, %v720
        %v722 = vsel %vm244, %v646, 0.0
        %v723 = vrot.slane %v722, 4
        %v724 = vadd.f32 %v722, %v723
        %v725 = vrot.slane %v724, 2
        %v726 = vadd.f32 %v724, %v725
        %v727 = vrot.slane %v726, 1
        %v728 = vadd.f32 %v726, %v727
        %v729 = vsel %vm244, %v647, 0.0
        %v730 = vrot.slane %v729, 4
        %v731 = vadd.f32 %v729, %v730
        %v732 = vrot.slane %v731, 2
        %v733 = vadd.f32 %v731, %v732
        %v734 = vrot.slane %v733, 1
        %v735 = vadd.f32 %v733, %v734
        %v736 = vsel %vm244, %v648, 0.0
        %v737 = vrot.slane %v736, 4
        %v738 = vadd.f32 %v736, %v737
        %v739 = vrot.slane %v738, 2
        %v740 = vadd.f32 %v738, %v739
        %v741 = vrot.slane %v740, 1
        %v742 = vadd.f32 %v740, %v741
        %v743 = vsel %vm244, %v649, 0.0
        %v744 = vrot.slane %v743, 4
        %v745 = vadd.f32 %v743, %v744
        %v746 = vrot.slane %v745, 2
        %v747 = vadd.f32 %v745, %v746
        %v748 = vrot.slane %v747, 1
        %v749 = vadd.f32 %v747, %v748
        %v750 = vsel %vm244, %v650, 0.0
        %v751 = vrot.slane %v750, 4
        %v752 = vadd.f32 %v750, %v751
        %v753 = vrot.slane %v752, 2
        %v754 = vadd.f32 %v752, %v753
        %v755 = vrot.slane %v754, 1
        %v756 = vadd.f32 %v754, %v755
        %v757 = vsel %vm244, %v651, 0.0
        %v758 = vrot.slane %v757, 4
        %v759 = vadd.f32 %v757, %v758
        %v760 = vrot.slane %v759, 2
        %v761 = vadd.f32 %v759, %v760
        %v762 = vrot.slane %v761, 1
        %v763 = vadd.f32 %v761, %v762
        %772 = vrot.lane.b32.xlu0 %v658, 124
        %v773 = vpop.permute.xlu0 %772
        %774 = vrot.lane.b32.xlu0 %v665, 124
        %v775 = vpop.permute.xlu0 %774
        %776 = vrot.lane.b32.xlu0 %v672, 124
        %v777 = vpop.permute.xlu0 %776
        %778 = vrot.lane.b32.xlu0 %v679, 124
        %v779 = vpop.permute.xlu0 %778
        %780 = vrot.lane.b32.xlu0 %v686, 124
        %v781 = vpop.permute.xlu0 %780
        %782 = vrot.lane.b32.xlu0 %v693, 124
        %v783 = vpop.permute.xlu0 %782
        %784 = vrot.lane.b32.xlu0 %v700, 124
        %v785 = vpop.permute.xlu0 %784
        %786 = vrot.lane.b32.xlu0 %v707, 124
        %v787 = vpop.permute.xlu0 %786
        %v796 = vmax.f32 %v658, %v773
        %v797 = vmax.f32 %v665, %v775
        %v798 = vmax.f32 %v672, %v777
        %v799 = vmax.f32 %v679, %v779
        %v800 = vmax.f32 %v686, %v781
        %v801 = vmax.f32 %v693, %v783
        %v802 = vmax.f32 %v700, %v785
        %v803 = vmax.f32 %v707, %v787
        %812 = vrot.lane.b32.xlu0 %v714, 124
        %v813 = vpop.permute.xlu0 %812
        %814 = vrot.lane.b32.xlu0 %v721, 124
        %v815 = vpop.permute.xlu0 %814
        %816 = vrot.lane.b32.xlu0 %v728, 124
        %v817 = vpop.permute.xlu0 %816
        %818 = vrot.lane.b32.xlu0 %v735, 124
        %v819 = vpop.permute.xlu0 %818
        %820 = vrot.lane.b32.xlu0 %v742, 124
        %v821 = vpop.permute.xlu0 %820
        %822 = vrot.lane.b32.xlu0 %v749, 124
        %v823 = vpop.permute.xlu0 %822
        %824 = vrot.lane.b32.xlu0 %v756, 124
        %v825 = vpop.permute.xlu0 %824
        %826 = vrot.lane.b32.xlu0 %v763, 124
        %v827 = vpop.permute.xlu0 %826
        %v836 = vadd.f32 %v714, %v813
        %v837 = vadd.f32 %v721, %v815
        %v838 = vadd.f32 %v728, %v817
        %v839 = vadd.f32 %v735, %v819
        %v840 = vadd.f32 %v742, %v821
        %v841 = vadd.f32 %v749, %v823
        %v842 = vadd.f32 %v756, %v825
        %v843 = vadd.f32 %v763, %v827
        %844 = vrot.lane.b32.xlu0 %v658, 120
        %v845 = vpop.permute.xlu0 %844
        %846 = vrot.lane.b32.xlu0 %v665, 120
        %v847 = vpop.permute.xlu0 %846
        %848 = vrot.lane.b32.xlu0 %v672, 120
        %v849 = vpop.permute.xlu0 %848
        %850 = vrot.lane.b32.xlu0 %v679, 120
        %v851 = vpop.permute.xlu0 %850
        %852 = vrot.lane.b32.xlu0 %v686, 120
        %v853 = vpop.permute.xlu0 %852
        %854 = vrot.lane.b32.xlu0 %v693, 120
        %v855 = vpop.permute.xlu0 %854
        %856 = vrot.lane.b32.xlu0 %v700, 120
        %v857 = vpop.permute.xlu0 %856
        %858 = vrot.lane.b32.xlu0 %v707, 120
        %v859 = vpop.permute.xlu0 %858
        %v868 = vmax.f32 %v796, %v845
        %v869 = vmax.f32 %v797, %v847
        %v870 = vmax.f32 %v798, %v849
        %v871 = vmax.f32 %v799, %v851
        %v872 = vmax.f32 %v800, %v853
        %v873 = vmax.f32 %v801, %v855
        %v874 = vmax.f32 %v802, %v857
        %v875 = vmax.f32 %v803, %v859
        %876 = vrot.lane.b32.xlu0 %v714, 120
        %v877 = vpop.permute.xlu0 %876
        %878 = vrot.lane.b32.xlu0 %v721, 120
        %v879 = vpop.permute.xlu0 %878
        %880 = vrot.lane.b32.xlu0 %v728, 120
        %v881 = vpop.permute.xlu0 %880
        %882 = vrot.lane.b32.xlu0 %v735, 120
        %v883 = vpop.permute.xlu0 %882
        %884 = vrot.lane.b32.xlu0 %v742, 120
        %v885 = vpop.permute.xlu0 %884
        %886 = vrot.lane.b32.xlu0 %v749, 120
        %v887 = vpop.permute.xlu0 %886
        %888 = vrot.lane.b32.xlu0 %v756, 120
        %v889 = vpop.permute.xlu0 %888
        %890 = vrot.lane.b32.xlu0 %v763, 120
        %v891 = vpop.permute.xlu0 %890
        %v900 = vadd.f32 %v836, %v877
        %v901 = vadd.f32 %v837, %v879
        %v902 = vadd.f32 %v838, %v881
        %v903 = vadd.f32 %v839, %v883
        %v904 = vadd.f32 %v840, %v885
        %v905 = vadd.f32 %v841, %v887
        %v906 = vadd.f32 %v842, %v889
        %v907 = vadd.f32 %v843, %v891
        %908 = vrot.lane.b32.xlu0 %v658, 116
        %v909 = vpop.permute.xlu0 %908
        %910 = vrot.lane.b32.xlu0 %v665, 116
        %v911 = vpop.permute.xlu0 %910
        %912 = vrot.lane.b32.xlu0 %v672, 116
        %v913 = vpop.permute.xlu0 %912
        %914 = vrot.lane.b32.xlu0 %v679, 116
        %v915 = vpop.permute.xlu0 %914
        %916 = vrot.lane.b32.xlu0 %v686, 116
        %v917 = vpop.permute.xlu0 %916
        %918 = vrot.lane.b32.xlu0 %v693, 116
        %v919 = vpop.permute.xlu0 %918
        %920 = vrot.lane.b32.xlu0 %v700, 116
        %v921 = vpop.permute.xlu0 %920
        %922 = vrot.lane.b32.xlu0 %v707, 116
        %v923 = vpop.permute.xlu0 %922
        %v932 = vmax.f32 %v868, %v909
        %v933 = vmax.f32 %v869, %v911
        %v934 = vmax.f32 %v870, %v913
        %v935 = vmax.f32 %v871, %v915
        %v936 = vmax.f32 %v872, %v917
        %v937 = vmax.f32 %v873, %v919
        %v938 = vmax.f32 %v874, %v921
        %v939 = vmax.f32 %v875, %v923
        %940 = vrot.lane.b32.xlu0 %v714, 116
        %v941 = vpop.permute.xlu0 %940
        %942 = vrot.lane.b32.xlu0 %v721, 116
        %v943 = vpop.permute.xlu0 %942
        %944 = vrot.lane.b32.xlu0 %v728, 116
        %v945 = vpop.permute.xlu0 %944
        %946 = vrot.lane.b32.xlu0 %v735, 116
        %v947 = vpop.permute.xlu0 %946
        %948 = vrot.lane.b32.xlu0 %v742, 116
        %v949 = vpop.permute.xlu0 %948
        %950 = vrot.lane.b32.xlu0 %v749, 116
        %v951 = vpop.permute.xlu0 %950
        %952 = vrot.lane.b32.xlu0 %v756, 116
        %v953 = vpop.permute.xlu0 %952
        %954 = vrot.lane.b32.xlu0 %v763, 116
        %v955 = vpop.permute.xlu0 %954
        %v964 = vadd.f32 %v900, %v941
        %v965 = vadd.f32 %v901, %v943
        %v966 = vadd.f32 %v902, %v945
        %v967 = vadd.f32 %v903, %v947
        %v968 = vadd.f32 %v904, %v949
        %v969 = vadd.f32 %v905, %v951
        %v970 = vadd.f32 %v906, %v953
        %v971 = vadd.f32 %v907, %v955
        %v972 = vmul.f32 %v964, 0.0625
        %v973 = vmul.f32 %v965, 0.0625
        %v974 = vmul.f32 %v966, 0.0625
        %v975 = vmul.f32 %v967, 0.0625
        %v976 = vmul.f32 %v968, 0.0625
        %v977 = vmul.f32 %v969, 0.0625
        %v978 = vmul.f32 %v970, 0.0625
        %v979 = vmul.f32 %v971, 0.0625
        %v980 = vsub.f32 %v932, %v972
        %v981 = vsub.f32 %v933, %v973
        %v982 = vsub.f32 %v934, %v974
        %v983 = vsub.f32 %v935, %v975
        %v984 = vsub.f32 %v936, %v976
        %v985 = vsub.f32 %v937, %v977
        %v986 = vsub.f32 %v938, %v978
        %v987 = vsub.f32 %v939, %v979
        %v988 = vmul.f32 %v235, %v980
        %v989 = vmul.f32 %v235, %v981
        %v990 = vmul.f32 %v235, %v982
        %v991 = vmul.f32 %v235, %v983
        %v992 = vmul.f32 %v235, %v984
        %v993 = vmul.f32 %v235, %v985
        %v994 = vmul.f32 %v235, %v986
        %v995 = vmul.f32 %v235, %v987
        %v996 = vadd.f32 %v972, %v988
        %v997 = vadd.f32 %v973, %v989
        %v998 = vadd.f32 %v974, %v990
        %v999 = vadd.f32 %v975, %v991
        %v1000 = vadd.f32 %v976, %v992
        %v1001 = vadd.f32 %v977, %v993
        %v1002 = vadd.f32 %v978, %v994
        %v1003 = vadd.f32 %v979, %v995
        %v1012 = vrot.slane %v997, 7
        %v1013 = vsel %vm606, %v1012, %v996
        %v1014 = vrot.slane %v998, 6
        %v1015 = vsel %vm609, %v1014, %v1013
        %v1016 = vrot.slane %v999, 5
        %v1017 = vsel %vm612, %v1016, %v1015
        %v1018 = vrot.slane %v1000, 4
        %v1019 = vsel %vm615, %v1018, %v1017
        %v1020 = vrot.slane %v1001, 3
        %v1021 = vsel %vm618, %v1020, %v1019
        %v1022 = vrot.slane %v1002, 2
        %v1023 = vsel %vm621, %v1022, %v1021
        %v1024 = vrot.slane %v1003, 1
        %v1025 = vsel %vm624, %v1024, %v1023
        %1026 = vrot.lane.b32.xlu0 %v1025, 16
        %v1027 = vpop.permute.xlu0 %1026
        %vm1029 = vcmask 162944
        %1030 = vst.msk [vmem:[#allocation2] sm:$0xff] %vm1029, %v1027
        %1031 = vrot.lane.b32.xlu0 %v1025, 4
        %v1032 = vpop.permute.xlu0 %1031
        %vm1034 = vcmask 195744
        %1035 = vst.msk [vmem:[#allocation2] sm:$0xff] %vm1034, %v1032
        %1036 = vrot.lane.b32.xlu0 %v1025, 120
        %v1037 = vpop.permute.xlu0 %1036
        %vm1039 = vcmask 228544
        %1040 = vst.msk [vmem:[#allocation2] sm:$0xff] %vm1039, %v1037
        %1041 = vrot.lane.b32.xlu0 %v1025, 108
        %v1042 = vpop.permute.xlu0 %1041
        %vm1044 = vcmask 261344
        %1045 = vst.msk [vmem:[#allocation2] sm:$0xff] %vm1044, %v1042
        %v1046 = vld [vmem:[%s204 + $0x8] sm:$0xf]
        %v1047 = vld [vmem:[%s204 + $0x18] sm:$0xf]
        %v1048 = vld [vmem:[%s204 + $0x28] sm:$0xf]
        %v1049 = vld [vmem:[%s204 + $0x38] sm:$0xf]
        %v1050 = vld [vmem:[%s204 + $0x48] sm:$0xf]
        %v1051 = vld [vmem:[%s204 + $0x58] sm:$0xf]
        %v1052 = vld [vmem:[%s204 + $0x68] sm:$0xf]
        %v1053 = vld [vmem:[%s204 + $0x78] sm:$0xf]
        %v1054 = vsel %vm244, %v1046, -inf
        %v1055 = vrot.slane %v1054, 4
        %v1056 = vmax.f32 %v1054, %v1055
        %v1057 = vrot.slane %v1056, 2
        %v1058 = vmax.f32 %v1056, %v1057
        %v1059 = vrot.slane %v1058, 1
        %v1060 = vmax.f32 %v1058, %v1059
        %v1061 = vsel %vm244, %v1047, -inf
        %v1062 = vrot.slane %v1061, 4
        %v1063 = vmax.f32 %v1061, %v1062
        %v1064 = vrot.slane %v1063, 2
        %v1065 = vmax.f32 %v1063, %v1064
        %v1066 = vrot.slane %v1065, 1
        %v1067 = vmax.f32 %v1065, %v1066
        %v1068 = vsel %vm244, %v1048, -inf
        %v1069 = vrot.slane %v1068, 4
        %v1070 = vmax.f32 %v1068, %v1069
        %v1071 = vrot.slane %v1070, 2
        %v1072 = vmax.f32 %v1070, %v1071
        %v1073 = vrot.slane %v1072, 1
        %v1074 = vmax.f32 %v1072, %v1073
        %v1075 = vsel %vm244, %v1049, -inf
        %v1076 = vrot.slane %v1075, 4
        %v1077 = vmax.f32 %v1075, %v1076
        %v1078 = vrot.slane %v1077, 2
        %v1079 = vmax.f32 %v1077, %v1078
        %v1080 = vrot.slane %v1079, 1
        %v1081 = vmax.f32 %v1079, %v1080
        %v1082 = vsel %vm244, %v1050, -inf
        %v1083 = vrot.slane %v1082, 4
        %v1084 = vmax.f32 %v1082, %v1083
        %v1085 = vrot.slane %v1084, 2
        %v1086 = vmax.f32 %v1084, %v1085
        %v1087 = vrot.slane %v1086, 1
        %v1088 = vmax.f32 %v1086, %v1087
        %v1089 = vsel %vm244, %v1051, -inf
        %v1090 = vrot.slane %v1089, 4
        %v1091 = vmax.f32 %v1089, %v1090
        %v1092 = vrot.slane %v1091, 2
        %v1093 = vmax.f32 %v1091, %v1092
        %v1094 = vrot.slane %v1093, 1
        %v1095 = vmax.f32 %v1093, %v1094
        %v1096 = vsel %vm244, %v1052, -inf
        %v1097 = vrot.slane %v1096, 4
        %v1098 = vmax.f32 %v1096, %v1097
        %v1099 = vrot.slane %v1098, 2
        %v1100 = vmax.f32 %v1098, %v1099
        %v1101 = vrot.slane %v1100, 1
        %v1102 = vmax.f32 %v1100, %v1101
        %v1103 = vsel %vm244, %v1053, -inf
        %v1104 = vrot.slane %v1103, 4
        %v1105 = vmax.f32 %v1103, %v1104
        %v1106 = vrot.slane %v1105, 2
        %v1107 = vmax.f32 %v1105, %v1106
        %v1108 = vrot.slane %v1107, 1
        %v1109 = vmax.f32 %v1107, %v1108
        %v1110 = vsel %vm244, %v1046, 0.0
        %v1111 = vrot.slane %v1110, 4
        %v1112 = vadd.f32 %v1110, %v1111
        %v1113 = vrot.slane %v1112, 2
        %v1114 = vadd.f32 %v1112, %v1113
        %v1115 = vrot.slane %v1114, 1
        %v1116 = vadd.f32 %v1114, %v1115
        %v1117 = vsel %vm244, %v1047, 0.0
        %v1118 = vrot.slane %v1117, 4
        %v1119 = vadd.f32 %v1117, %v1118
        %v1120 = vrot.slane %v1119, 2
        %v1121 = vadd.f32 %v1119, %v1120
        %v1122 = vrot.slane %v1121, 1
        %v1123 = vadd.f32 %v1121, %v1122
        %v1124 = vsel %vm244, %v1048, 0.0
        %v1125 = vrot.slane %v1124, 4
        %v1126 = vadd.f32 %v1124, %v1125
        %v1127 = vrot.slane %v1126, 2
        %v1128 = vadd.f32 %v1126, %v1127
        %v1129 = vrot.slane %v1128, 1
        %v1130 = vadd.f32 %v1128, %v1129
        %v1131 = vsel %vm244, %v1049, 0.0
        %v1132 = vrot.slane %v1131, 4
        %v1133 = vadd.f32 %v1131, %v1132
        %v1134 = vrot.slane %v1133, 2
        %v1135 = vadd.f32 %v1133, %v1134
        %v1136 = vrot.slane %v1135, 1
        %v1137 = vadd.f32 %v1135, %v1136
        %v1138 = vsel %vm244, %v1050, 0.0
        %v1139 = vrot.slane %v1138, 4
        %v1140 = vadd.f32 %v1138, %v1139
        %v1141 = vrot.slane %v1140, 2
        %v1142 = vadd.f32 %v1140, %v1141
        %v1143 = vrot.slane %v1142, 1
        %v1144 = vadd.f32 %v1142, %v1143
        %v1145 = vsel %vm244, %v1051, 0.0
        %v1146 = vrot.slane %v1145, 4
        %v1147 = vadd.f32 %v1145, %v1146
        %v1148 = vrot.slane %v1147, 2
        %v1149 = vadd.f32 %v1147, %v1148
        %v1150 = vrot.slane %v1149, 1
        %v1151 = vadd.f32 %v1149, %v1150
        %v1152 = vsel %vm244, %v1052, 0.0
        %v1153 = vrot.slane %v1152, 4
        %v1154 = vadd.f32 %v1152, %v1153
        %v1155 = vrot.slane %v1154, 2
        %v1156 = vadd.f32 %v1154, %v1155
        %v1157 = vrot.slane %v1156, 1
        %v1158 = vadd.f32 %v1156, %v1157
        %v1159 = vsel %vm244, %v1053, 0.0
        %v1160 = vrot.slane %v1159, 4
        %v1161 = vadd.f32 %v1159, %v1160
        %v1162 = vrot.slane %v1161, 2
        %v1163 = vadd.f32 %v1161, %v1162
        %v1164 = vrot.slane %v1163, 1
        %v1165 = vadd.f32 %v1163, %v1164
        %1174 = vrot.lane.b32.xlu0 %v1060, 124
        %v1175 = vpop.permute.xlu0 %1174
        %1176 = vrot.lane.b32.xlu0 %v1067, 124
        %v1177 = vpop.permute.xlu0 %1176
        %1178 = vrot.lane.b32.xlu0 %v1074, 124
        %v1179 = vpop.permute.xlu0 %1178
        %1180 = vrot.lane.b32.xlu0 %v1081, 124
        %v1181 = vpop.permute.xlu0 %1180
        %1182 = vrot.lane.b32.xlu0 %v1088, 124
        %v1183 = vpop.permute.xlu0 %1182
        %1184 = vrot.lane.b32.xlu0 %v1095, 124
        %v1185 = vpop.permute.xlu0 %1184
        %1186 = vrot.lane.b32.xlu0 %v1102, 124
        %v1187 = vpop.permute.xlu0 %1186
        %1188 = vrot.lane.b32.xlu0 %v1109, 124
        %v1189 = vpop.permute.xlu0 %1188
        %v1198 = vmax.f32 %v1060, %v1175
        %v1199 = vmax.f32 %v1067, %v1177
        %v1200 = vmax.f32 %v1074, %v1179
        %v1201 = vmax.f32 %v1081, %v1181
        %v1202 = vmax.f32 %v1088, %v1183
        %v1203 = vmax.f32 %v1095, %v1185
        %v1204 = vmax.f32 %v1102, %v1187
        %v1205 = vmax.f32 %v1109, %v1189
        %1214 = vrot.lane.b32.xlu0 %v1116, 124
        %v1215 = vpop.permute.xlu0 %1214
        %1216 = vrot.lane.b32.xlu0 %v1123, 124
        %v1217 = vpop.permute.xlu0 %1216
        %1218 = vrot.lane.b32.xlu0 %v1130, 124
        %v1219 = vpop.permute.xlu0 %1218
        %1220 = vrot.lane.b32.xlu0 %v1137, 124
        %v1221 = vpop.permute.xlu0 %1220
        %1222 = vrot.lane.b32.xlu0 %v1144, 124
        %v1223 = vpop.permute.xlu0 %1222
        %1224 = vrot.lane.b32.xlu0 %v1151, 124
        %v1225 = vpop.permute.xlu0 %1224
        %1226 = vrot.lane.b32.xlu0 %v1158, 124
        %v1227 = vpop.permute.xlu0 %1226
        %1228 = vrot.lane.b32.xlu0 %v1165, 124
        %v1229 = vpop.permute.xlu0 %1228
        %v1238 = vadd.f32 %v1116, %v1215
        %v1239 = vadd.f32 %v1123, %v1217
        %v1240 = vadd.f32 %v1130, %v1219
        %v1241 = vadd.f32 %v1137, %v1221
        %v1242 = vadd.f32 %v1144, %v1223
        %v1243 = vadd.f32 %v1151, %v1225
        %v1244 = vadd.f32 %v1158, %v1227
        %v1245 = vadd.f32 %v1165, %v1229
        %1246 = vrot.lane.b32.xlu0 %v1060, 120
        %v1247 = vpop.permute.xlu0 %1246
        %1248 = vrot.lane.b32.xlu0 %v1067, 120
        %v1249 = vpop.permute.xlu0 %1248
        %1250 = vrot.lane.b32.xlu0 %v1074, 120
        %v1251 = vpop.permute.xlu0 %1250
        %1252 = vrot.lane.b32.xlu0 %v1081, 120
        %v1253 = vpop.permute.xlu0 %1252
        %1254 = vrot.lane.b32.xlu0 %v1088, 120
        %v1255 = vpop.permute.xlu0 %1254
        %1256 = vrot.lane.b32.xlu0 %v1095, 120
        %v1257 = vpop.permute.xlu0 %1256
        %1258 = vrot.lane.b32.xlu0 %v1102, 120
        %v1259 = vpop.permute.xlu0 %1258
        %1260 = vrot.lane.b32.xlu0 %v1109, 120
        %v1261 = vpop.permute.xlu0 %1260
        %v1270 = vmax.f32 %v1198, %v1247
        %v1271 = vmax.f32 %v1199, %v1249
        %v1272 = vmax.f32 %v1200, %v1251
        %v1273 = vmax.f32 %v1201, %v1253
        %v1274 = vmax.f32 %v1202, %v1255
        %v1275 = vmax.f32 %v1203, %v1257
        %v1276 = vmax.f32 %v1204, %v1259
        %v1277 = vmax.f32 %v1205, %v1261
        %1278 = vrot.lane.b32.xlu0 %v1116, 120
        %v1279 = vpop.permute.xlu0 %1278
        %1280 = vrot.lane.b32.xlu0 %v1123, 120
        %v1281 = vpop.permute.xlu0 %1280
        %1282 = vrot.lane.b32.xlu0 %v1130, 120
        %v1283 = vpop.permute.xlu0 %1282
        %1284 = vrot.lane.b32.xlu0 %v1137, 120
        %v1285 = vpop.permute.xlu0 %1284
        %1286 = vrot.lane.b32.xlu0 %v1144, 120
        %v1287 = vpop.permute.xlu0 %1286
        %1288 = vrot.lane.b32.xlu0 %v1151, 120
        %v1289 = vpop.permute.xlu0 %1288
        %1290 = vrot.lane.b32.xlu0 %v1158, 120
        %v1291 = vpop.permute.xlu0 %1290
        %1292 = vrot.lane.b32.xlu0 %v1165, 120
        %v1293 = vpop.permute.xlu0 %1292
        %v1302 = vadd.f32 %v1238, %v1279
        %v1303 = vadd.f32 %v1239, %v1281
        %v1304 = vadd.f32 %v1240, %v1283
        %v1305 = vadd.f32 %v1241, %v1285
        %v1306 = vadd.f32 %v1242, %v1287
        %v1307 = vadd.f32 %v1243, %v1289
        %v1308 = vadd.f32 %v1244, %v1291
        %v1309 = vadd.f32 %v1245, %v1293
        %1310 = vrot.lane.b32.xlu0 %v1060, 116
        %v1311 = vpop.permute.xlu0 %1310
        %1312 = vrot.lane.b32.xlu0 %v1067, 116
        %v1313 = vpop.permute.xlu0 %1312
        %1314 = vrot.lane.b32.xlu0 %v1074, 116
        %v1315 = vpop.permute.xlu0 %1314
        %1316 = vrot.lane.b32.xlu0 %v1081, 116
        %v1317 = vpop.permute.xlu0 %1316
        %1318 = vrot.lane.b32.xlu0 %v1088, 116
        %v1319 = vpop.permute.xlu0 %1318
        %1320 = vrot.lane.b32.xlu0 %v1095, 116
        %v1321 = vpop.permute.xlu0 %1320
        %1322 = vrot.lane.b32.xlu0 %v1102, 116
        %v1323 = vpop.permute.xlu0 %1322
        %1324 = vrot.lane.b32.xlu0 %v1109, 116
        %v1325 = vpop.permute.xlu0 %1324
        %v1334 = vmax.f32 %v1270, %v1311
        %v1335 = vmax.f32 %v1271, %v1313
        %v1336 = vmax.f32 %v1272, %v1315
        %v1337 = vmax.f32 %v1273, %v1317
        %v1338 = vmax.f32 %v1274, %v1319
        %v1339 = vmax.f32 %v1275, %v1321
        %v1340 = vmax.f32 %v1276, %v1323
        %v1341 = vmax.f32 %v1277, %v1325
        %1342 = vrot.lane.b32.xlu0 %v1116, 116
        %v1343 = vpop.permute.xlu0 %1342
        %1344 = vrot.lane.b32.xlu0 %v1123, 116
        %v1345 = vpop.permute.xlu0 %1344
        %1346 = vrot.lane.b32.xlu0 %v1130, 116
        %v1347 = vpop.permute.xlu0 %1346
        %1348 = vrot.lane.b32.xlu0 %v1137, 116
        %v1349 = vpop.permute.xlu0 %1348
        %1350 = vrot.lane.b32.xlu0 %v1144, 116
        %v1351 = vpop.permute.xlu0 %1350
        %1352 = vrot.lane.b32.xlu0 %v1151, 116
        %v1353 = vpop.permute.xlu0 %1352
        %1354 = vrot.lane.b32.xlu0 %v1158, 116
        %v1355 = vpop.permute.xlu0 %1354
        %1356 = vrot.lane.b32.xlu0 %v1165, 116
        %v1357 = vpop.permute.xlu0 %1356
        %v1366 = vadd.f32 %v1302, %v1343
        %v1367 = vadd.f32 %v1303, %v1345
        %v1368 = vadd.f32 %v1304, %v1347
        %v1369 = vadd.f32 %v1305, %v1349
        %v1370 = vadd.f32 %v1306, %v1351
        %v1371 = vadd.f32 %v1307, %v1353
        %v1372 = vadd.f32 %v1308, %v1355
        %v1373 = vadd.f32 %v1309, %v1357
        %v1374 = vmul.f32 %v1366, 0.0625
        %v1375 = vmul.f32 %v1367, 0.0625
        %v1376 = vmul.f32 %v1368, 0.0625
        %v1377 = vmul.f32 %v1369, 0.0625
        %v1378 = vmul.f32 %v1370, 0.0625
        %v1379 = vmul.f32 %v1371, 0.0625
        %v1380 = vmul.f32 %v1372, 0.0625
        %v1381 = vmul.f32 %v1373, 0.0625
        %v1382 = vsub.f32 %v1334, %v1374
        %v1383 = vsub.f32 %v1335, %v1375
        %v1384 = vsub.f32 %v1336, %v1376
        %v1385 = vsub.f32 %v1337, %v1377
        %v1386 = vsub.f32 %v1338, %v1378
        %v1387 = vsub.f32 %v1339, %v1379
        %v1388 = vsub.f32 %v1340, %v1380
        %v1389 = vsub.f32 %v1341, %v1381
        %v1390 = vmul.f32 %v235, %v1382
        %v1391 = vmul.f32 %v235, %v1383
        %v1392 = vmul.f32 %v235, %v1384
        %v1393 = vmul.f32 %v235, %v1385
        %v1394 = vmul.f32 %v235, %v1386
        %v1395 = vmul.f32 %v235, %v1387
        %v1396 = vmul.f32 %v235, %v1388
        %v1397 = vmul.f32 %v235, %v1389
        %v1398 = vadd.f32 %v1374, %v1390
        %v1399 = vadd.f32 %v1375, %v1391
        %v1400 = vadd.f32 %v1376, %v1392
        %v1401 = vadd.f32 %v1377, %v1393
        %v1402 = vadd.f32 %v1378, %v1394
        %v1403 = vadd.f32 %v1379, %v1395
        %v1404 = vadd.f32 %v1380, %v1396
        %v1405 = vadd.f32 %v1381, %v1397
        %v1414 = vrot.slane %v1399, 7
        %v1415 = vsel %vm606, %v1414, %v1398
        %v1416 = vrot.slane %v1400, 6
        %v1417 = vsel %vm609, %v1416, %v1415
        %v1418 = vrot.slane %v1401, 5
        %v1419 = vsel %vm612, %v1418, %v1417
        %v1420 = vrot.slane %v1402, 4
        %v1421 = vsel %vm615, %v1420, %v1419
        %v1422 = vrot.slane %v1403, 3
        %v1423 = vsel %vm618, %v1422, %v1421
        %v1424 = vrot.slane %v1404, 2
        %v1425 = vsel %vm621, %v1424, %v1423
        %v1426 = vrot.slane %v1405, 1
        %v1427 = vsel %vm624, %v1426, %v1425
        %1428 = vrot.lane.b32.xlu0 %v1427, 32
        %v1429 = vpop.permute.xlu0 %1428
        %vm1431 = vcmask 294144
        %1432 = vst.msk [vmem:[#allocation2] sm:$0xff] %vm1431, %v1429
        %1433 = vrot.lane.b32.xlu0 %v1427, 20
        %v1434 = vpop.permute.xlu0 %1433
        %vm1436 = vcmask 326944
        %1437 = vst.msk [vmem:[#allocation2] sm:$0xff] %vm1436, %v1434
        %1438 = vrot.lane.b32.xlu0 %v1427, 8
        %v1439 = vpop.permute.xlu0 %1438
        %vm1441 = vcmask 359744
        %1442 = vst.msk [vmem:[#allocation2] sm:$0xff] %vm1441, %v1439
        %1443 = vrot.lane.b32.xlu0 %v1427, 124
        %v1444 = vpop.permute.xlu0 %1443
        %vm1446 = vcmask 392544
        %1447 = vst.msk [vmem:[#allocation2] sm:$0xff] %vm1446, %v1444
        %v1448 = vld [vmem:[%s204 + $0xc] sm:$0xf]
        %v1449 = vld [vmem:[%s204 + $0x1c] sm:$0xf]
        %v1450 = vld [vmem:[%s204 + $0x2c] sm:$0xf]
        %v1451 = vld [vmem:[%s204 + $0x3c] sm:$0xf]
        %v1452 = vld [vmem:[%s204 + $0x4c] sm:$0xf]
        %v1453 = vld [vmem:[%s204 + $0x5c] sm:$0xf]
        %v1454 = vld [vmem:[%s204 + $0x6c] sm:$0xf]
        %v1455 = vld [vmem:[%s204 + $0x7c] sm:$0xf]
        %v1456 = vsel %vm244, %v1448, -inf
        %v1457 = vrot.slane %v1456, 4
        %v1458 = vmax.f32 %v1456, %v1457
        %v1459 = vrot.slane %v1458, 2
        %v1460 = vmax.f32 %v1458, %v1459
        %v1461 = vrot.slane %v1460, 1
        %v1462 = vmax.f32 %v1460, %v1461
        %v1463 = vsel %vm244, %v1449, -inf
        %v1464 = vrot.slane %v1463, 4
        %v1465 = vmax.f32 %v1463, %v1464
        %v1466 = vrot.slane %v1465, 2
        %v1467 = vmax.f32 %v1465, %v1466
        %v1468 = vrot.slane %v1467, 1
        %v1469 = vmax.f32 %v1467, %v1468
        %v1470 = vsel %vm244, %v1450, -inf
        %v1471 = vrot.slane %v1470, 4
        %v1472 = vmax.f32 %v1470, %v1471
        %v1473 = vrot.slane %v1472, 2
        %v1474 = vmax.f32 %v1472, %v1473
        %v1475 = vrot.slane %v1474, 1
        %v1476 = vmax.f32 %v1474, %v1475
        %v1477 = vsel %vm244, %v1451, -inf
        %v1478 = vrot.slane %v1477, 4
        %v1479 = vmax.f32 %v1477, %v1478
        %v1480 = vrot.slane %v1479, 2
        %v1481 = vmax.f32 %v1479, %v1480
        %v1482 = vrot.slane %v1481, 1
        %v1483 = vmax.f32 %v1481, %v1482
        %v1484 = vsel %vm244, %v1452, -inf
        %v1485 = vrot.slane %v1484, 4
        %v1486 = vmax.f32 %v1484, %v1485
        %v1487 = vrot.slane %v1486, 2
        %v1488 = vmax.f32 %v1486, %v1487
        %v1489 = vrot.slane %v1488, 1
        %v1490 = vmax.f32 %v1488, %v1489
        %v1491 = vsel %vm244, %v1453, -inf
        %v1492 = vrot.slane %v1491, 4
        %v1493 = vmax.f32 %v1491, %v1492
        %v1494 = vrot.slane %v1493, 2
        %v1495 = vmax.f32 %v1493, %v1494
        %v1496 = vrot.slane %v1495, 1
        %v1497 = vmax.f32 %v1495, %v1496
        %v1498 = vsel %vm244, %v1454, -inf
        %v1499 = vrot.slane %v1498, 4
        %v1500 = vmax.f32 %v1498, %v1499
        %v1501 = vrot.slane %v1500, 2
        %v1502 = vmax.f32 %v1500, %v1501
        %v1503 = vrot.slane %v1502, 1
        %v1504 = vmax.f32 %v1502, %v1503
        %v1505 = vsel %vm244, %v1455, -inf
        %v1506 = vrot.slane %v1505, 4
        %v1507 = vmax.f32 %v1505, %v1506
        %v1508 = vrot.slane %v1507, 2
        %v1509 = vmax.f32 %v1507, %v1508
        %v1510 = vrot.slane %v1509, 1
        %v1511 = vmax.f32 %v1509, %v1510
        %v1512 = vsel %vm244, %v1448, 0.0
        %v1513 = vrot.slane %v1512, 4
        %v1514 = vadd.f32 %v1512, %v1513
        %v1515 = vrot.slane %v1514, 2
        %v1516 = vadd.f32 %v1514, %v1515
        %v1517 = vrot.slane %v1516, 1
        %v1518 = vadd.f32 %v1516, %v1517
        %v1519 = vsel %vm244, %v1449, 0.0
        %v1520 = vrot.slane %v1519, 4
        %v1521 = vadd.f32 %v1519, %v1520
        %v1522 = vrot.slane %v1521, 2
        %v1523 = vadd.f32 %v1521, %v1522
        %v1524 = vrot.slane %v1523, 1
        %v1525 = vadd.f32 %v1523, %v1524
        %v1526 = vsel %vm244, %v1450, 0.0
        %v1527 = vrot.slane %v1526, 4
        %v1528 = vadd.f32 %v1526, %v1527
        %v1529 = vrot.slane %v1528, 2
        %v1530 = vadd.f32 %v1528, %v1529
        %v1531 = vrot.slane %v1530, 1
        %v1532 = vadd.f32 %v1530, %v1531
        %v1533 = vsel %vm244, %v1451, 0.0
        %v1534 = vrot.slane %v1533, 4
        %v1535 = vadd.f32 %v1533, %v1534
        %v1536 = vrot.slane %v1535, 2
        %v1537 = vadd.f32 %v1535, %v1536
        %v1538 = vrot.slane %v1537, 1
        %v1539 = vadd.f32 %v1537, %v1538
        %v1540 = vsel %vm244, %v1452, 0.0
        %v1541 = vrot.slane %v1540, 4
        %v1542 = vadd.f32 %v1540, %v1541
        %v1543 = vrot.slane %v1542, 2
        %v1544 = vadd.f32 %v1542, %v1543
        %v1545 = vrot.slane %v1544, 1
        %v1546 = vadd.f32 %v1544, %v1545
        %v1547 = vsel %vm244, %v1453, 0.0
        %v1548 = vrot.slane %v1547, 4
        %v1549 = vadd.f32 %v1547, %v1548
        %v1550 = vrot.slane %v1549, 2
        %v1551 = vadd.f32 %v1549, %v1550
        %v1552 = vrot.slane %v1551, 1
        %v1553 = vadd.f32 %v1551, %v1552
        %v1554 = vsel %vm244, %v1454, 0.0
        %v1555 = vrot.slane %v1554, 4
        %v1556 = vadd.f32 %v1554, %v1555
        %v1557 = vrot.slane %v1556, 2
        %v1558 = vadd.f32 %v1556, %v1557
        %v1559 = vrot.slane %v1558, 1
        %v1560 = vadd.f32 %v1558, %v1559
        %v1561 = vsel %vm244, %v1455, 0.0
        %v1562 = vrot.slane %v1561, 4
        %v1563 = vadd.f32 %v1561, %v1562
        %v1564 = vrot.slane %v1563, 2
        %v1565 = vadd.f32 %v1563, %v1564
        %v1566 = vrot.slane %v1565, 1
        %v1567 = vadd.f32 %v1565, %v1566
        %1576 = vrot.lane.b32.xlu0 %v1462, 124
        %v1577 = vpop.permute.xlu0 %1576
        %1578 = vrot.lane.b32.xlu0 %v1469, 124
        %v1579 = vpop.permute.xlu0 %1578
        %1580 = vrot.lane.b32.xlu0 %v1476, 124
        %v1581 = vpop.permute.xlu0 %1580
        %1582 = vrot.lane.b32.xlu0 %v1483, 124
        %v1583 = vpop.permute.xlu0 %1582
        %1584 = vrot.lane.b32.xlu0 %v1490, 124
        %v1585 = vpop.permute.xlu0 %1584
        %1586 = vrot.lane.b32.xlu0 %v1497, 124
        %v1587 = vpop.permute.xlu0 %1586
        %1588 = vrot.lane.b32.xlu0 %v1504, 124
        %v1589 = vpop.permute.xlu0 %1588
        %1590 = vrot.lane.b32.xlu0 %v1511, 124
        %v1591 = vpop.permute.xlu0 %1590
        %v1600 = vmax.f32 %v1462, %v1577
        %v1601 = vmax.f32 %v1469, %v1579
        %v1602 = vmax.f32 %v1476, %v1581
        %v1603 = vmax.f32 %v1483, %v1583
        %v1604 = vmax.f32 %v1490, %v1585
        %v1605 = vmax.f32 %v1497, %v1587
        %v1606 = vmax.f32 %v1504, %v1589
        %v1607 = vmax.f32 %v1511, %v1591
        %1616 = vrot.lane.b32.xlu0 %v1518, 124
        %v1617 = vpop.permute.xlu0 %1616
        %1618 = vrot.lane.b32.xlu0 %v1525, 124
        %v1619 = vpop.permute.xlu0 %1618
        %1620 = vrot.lane.b32.xlu0 %v1532, 124
        %v1621 = vpop.permute.xlu0 %1620
        %1622 = vrot.lane.b32.xlu0 %v1539, 124
        %v1623 = vpop.permute.xlu0 %1622
        %1624 = vrot.lane.b32.xlu0 %v1546, 124
        %v1625 = vpop.permute.xlu0 %1624
        %1626 = vrot.lane.b32.xlu0 %v1553, 124
        %v1627 = vpop.permute.xlu0 %1626
        %1628 = vrot.lane.b32.xlu0 %v1560, 124
        %v1629 = vpop.permute.xlu0 %1628
        %1630 = vrot.lane.b32.xlu0 %v1567, 124
        %v1631 = vpop.permute.xlu0 %1630
        %v1640 = vadd.f32 %v1518, %v1617
        %v1641 = vadd.f32 %v1525, %v1619
        %v1642 = vadd.f32 %v1532, %v1621
        %v1643 = vadd.f32 %v1539, %v1623
        %v1644 = vadd.f32 %v1546, %v1625
        %v1645 = vadd.f32 %v1553, %v1627
        %v1646 = vadd.f32 %v1560, %v1629
        %v1647 = vadd.f32 %v1567, %v1631
        %1648 = vrot.lane.b32.xlu0 %v1462, 120
        %v1649 = vpop.permute.xlu0 %1648
        %1650 = vrot.lane.b32.xlu0 %v1469, 120
        %v1651 = vpop.permute.xlu0 %1650
        %1652 = vrot.lane.b32.xlu0 %v1476, 120
        %v1653 = vpop.permute.xlu0 %1652
        %1654 = vrot.lane.b32.xlu0 %v1483, 120
        %v1655 = vpop.permute.xlu0 %1654
        %1656 = vrot.lane.b32.xlu0 %v1490, 120
        %v1657 = vpop.permute.xlu0 %1656
        %1658 = vrot.lane.b32.xlu0 %v1497, 120
        %v1659 = vpop.permute.xlu0 %1658
        %1660 = vrot.lane.b32.xlu0 %v1504, 120
        %v1661 = vpop.permute.xlu0 %1660
        %1662 = vrot.lane.b32.xlu0 %v1511, 120
        %v1663 = vpop.permute.xlu0 %1662
        %v1672 = vmax.f32 %v1600, %v1649
        %v1673 = vmax.f32 %v1601, %v1651
        %v1674 = vmax.f32 %v1602, %v1653
        %v1675 = vmax.f32 %v1603, %v1655
        %v1676 = vmax.f32 %v1604, %v1657
        %v1677 = vmax.f32 %v1605, %v1659
        %v1678 = vmax.f32 %v1606, %v1661
        %v1679 = vmax.f32 %v1607, %v1663
        %1680 = vrot.lane.b32.xlu0 %v1518, 120
        %v1681 = vpop.permute.xlu0 %1680
        %1682 = vrot.lane.b32.xlu0 %v1525, 120
        %v1683 = vpop.permute.xlu0 %1682
        %1684 = vrot.lane.b32.xlu0 %v1532, 120
        %v1685 = vpop.permute.xlu0 %1684
        %1686 = vrot.lane.b32.xlu0 %v1539, 120
        %v1687 = vpop.permute.xlu0 %1686
        %1688 = vrot.lane.b32.xlu0 %v1546, 120
        %v1689 = vpop.permute.xlu0 %1688
        %1690 = vrot.lane.b32.xlu0 %v1553, 120
        %v1691 = vpop.permute.xlu0 %1690
        %1692 = vrot.lane.b32.xlu0 %v1560, 120
        %v1693 = vpop.permute.xlu0 %1692
        %1694 = vrot.lane.b32.xlu0 %v1567, 120
        %v1695 = vpop.permute.xlu0 %1694
        %v1704 = vadd.f32 %v1640, %v1681
        %v1705 = vadd.f32 %v1641, %v1683
        %v1706 = vadd.f32 %v1642, %v1685
        %v1707 = vadd.f32 %v1643, %v1687
        %v1708 = vadd.f32 %v1644, %v1689
        %v1709 = vadd.f32 %v1645, %v1691
        %v1710 = vadd.f32 %v1646, %v1693
        %v1711 = vadd.f32 %v1647, %v1695
        %1712 = vrot.lane.b32.xlu0 %v1462, 116
        %v1713 = vpop.permute.xlu0 %1712
        %1714 = vrot.lane.b32.xlu0 %v1469, 116
        %v1715 = vpop.permute.xlu0 %1714
        %1716 = vrot.lane.b32.xlu0 %v1476, 116
        %v1717 = vpop.permute.xlu0 %1716
        %1718 = vrot.lane.b32.xlu0 %v1483, 116
        %v1719 = vpop.permute.xlu0 %1718
        %1720 = vrot.lane.b32.xlu0 %v1490, 116
        %v1721 = vpop.permute.xlu0 %1720
        %1722 = vrot.lane.b32.xlu0 %v1497, 116
        %v1723 = vpop.permute.xlu0 %1722
        %1724 = vrot.lane.b32.xlu0 %v1504, 116
        %v1725 = vpop.permute.xlu0 %1724
        %1726 = vrot.lane.b32.xlu0 %v1511, 116
        %v1727 = vpop.permute.xlu0 %1726
        %v1736 = vmax.f32 %v1672, %v1713
        %v1737 = vmax.f32 %v1673, %v1715
        %v1738 = vmax.f32 %v1674, %v1717
        %v1739 = vmax.f32 %v1675, %v1719
        %v1740 = vmax.f32 %v1676, %v1721
        %v1741 = vmax.f32 %v1677, %v1723
        %v1742 = vmax.f32 %v1678, %v1725
        %v1743 = vmax.f32 %v1679, %v1727
        %1744 = vrot.lane.b32.xlu0 %v1518, 116
        %v1745 = vpop.permute.xlu0 %1744
        %1746 = vrot.lane.b32.xlu0 %v1525, 116
        %v1747 = vpop.permute.xlu0 %1746
        %1748 = vrot.lane.b32.xlu0 %v1532, 116
        %v1749 = vpop.permute.xlu0 %1748
        %1750 = vrot.lane.b32.xlu0 %v1539, 116
        %v1751 = vpop.permute.xlu0 %1750
        %1752 = vrot.lane.b32.xlu0 %v1546, 116
        %v1753 = vpop.permute.xlu0 %1752
        %1754 = vrot.lane.b32.xlu0 %v1553, 116
        %v1755 = vpop.permute.xlu0 %1754
        %1756 = vrot.lane.b32.xlu0 %v1560, 116
        %v1757 = vpop.permute.xlu0 %1756
        %1758 = vrot.lane.b32.xlu0 %v1567, 116
        %v1759 = vpop.permute.xlu0 %1758
        %v1768 = vadd.f32 %v1704, %v1745
        %v1769 = vadd.f32 %v1705, %v1747
        %v1770 = vadd.f32 %v1706, %v1749
        %v1771 = vadd.f32 %v1707, %v1751
        %v1772 = vadd.f32 %v1708, %v1753
        %v1773 = vadd.f32 %v1709, %v1755
        %v1774 = vadd.f32 %v1710, %v1757
        %v1775 = vadd.f32 %v1711, %v1759
        %v1776 = vmul.f32 %v1768, 0.0625
        %v1777 = vmul.f32 %v1769, 0.0625
        %v1778 = vmul.f32 %v1770, 0.0625
        %v1779 = vmul.f32 %v1771, 0.0625
        %v1780 = vmul.f32 %v1772, 0.0625
        %v1781 = vmul.f32 %v1773, 0.0625
        %v1782 = vmul.f32 %v1774, 0.0625
        %v1783 = vmul.f32 %v1775, 0.0625
        %v1784 = vsub.f32 %v1736, %v1776
        %v1785 = vsub.f32 %v1737, %v1777
        %v1786 = vsub.f32 %v1738, %v1778
        %v1787 = vsub.f32 %v1739, %v1779
        %v1788 = vsub.f32 %v1740, %v1780
        %v1789 = vsub.f32 %v1741, %v1781
        %v1790 = vsub.f32 %v1742, %v1782
        %v1791 = vsub.f32 %v1743, %v1783
        %v1792 = vmul.f32 %v235, %v1784
        %v1793 = vmul.f32 %v235, %v1785
        %v1794 = vmul.f32 %v235, %v1786
        %v1795 = vmul.f32 %v235, %v1787
        %v1796 = vmul.f32 %v235, %v1788
        %v1797 = vmul.f32 %v235, %v1789
        %v1798 = vmul.f32 %v235, %v1790
        %v1799 = vmul.f32 %v235, %v1791
        %v1800 = vadd.f32 %v1776, %v1792
        %v1801 = vadd.f32 %v1777, %v1793
        %v1802 = vadd.f32 %v1778, %v1794
        %v1803 = vadd.f32 %v1779, %v1795
        %v1804 = vadd.f32 %v1780, %v1796
        %v1805 = vadd.f32 %v1781, %v1797
        %v1806 = vadd.f32 %v1782, %v1798
        %v1807 = vadd.f32 %v1783, %v1799
        %v1816 = vrot.slane %v1801, 7
        %v1817 = vsel %vm606, %v1816, %v1800
        %v1818 = vrot.slane %v1802, 6
        %v1819 = vsel %vm609, %v1818, %v1817
        %v1820 = vrot.slane %v1803, 5
        %v1821 = vsel %vm612, %v1820, %v1819
        %v1822 = vrot.slane %v1804, 4
        %v1823 = vsel %vm615, %v1822, %v1821
        %v1824 = vrot.slane %v1805, 3
        %v1825 = vsel %vm618, %v1824, %v1823
        %v1826 = vrot.slane %v1806, 2
        %v1827 = vsel %vm621, %v1826, %v1825
        %v1828 = vrot.slane %v1807, 1
        %v1829 = vsel %vm624, %v1828, %v1827
        %1830 = vrot.lane.b32.xlu0 %v1829, 48
        %v1831 = vpop.permute.xlu0 %1830
        %vm1833 = vcmask 425344
        %1834 = vst.msk [vmem:[#allocation2] sm:$0xff] %vm1833, %v1831
        %1835 = vrot.lane.b32.xlu0 %v1829, 36
        %v1836 = vpop.permute.xlu0 %1835
        %vm1838 = vcmask 458144
        %1839 = vst.msk [vmem:[#allocation2] sm:$0xff] %vm1838, %v1836
        %1840 = vrot.lane.b32.xlu0 %v1829, 24
        %v1841 = vpop.permute.xlu0 %1840
        %vm1843 = vcmask 490944
        %1844 = vst.msk [vmem:[#allocation2] sm:$0xff] %vm1843, %v1841
        %1845 = vrot.lane.b32.xlu0 %v1829, 12
        %v1846 = vpop.permute.xlu0 %1845
        %vm1848 = vcmask 523744
        %1849 = vst.msk [vmem:[#allocation2] sm:$0xff] %vm1848, %v1846
        %v1850 = vld [vmem:[#allocation2] sm:$0xff]
        %v1851 = vld [vmem:[#allocation7] sm:$0xff]
        %v1852 = vld [vmem:[#allocation7 + $0x8] sm:$0xff]
        %v1853 = vld [vmem:[#allocation7 + $0x10] sm:$0xff]
        %v1854 = vld [vmem:[#allocation7 + $0x18] sm:$0xff]
        %v1855 = vld [vmem:[#allocation7 + $0x20] sm:$0xff]
        %v1856 = vld [vmem:[#allocation7 + $0x28] sm:$0xff]
        %v1857 = vld [vmem:[#allocation7 + $0x30] sm:$0xff]
        %v1858 = vld [vmem:[#allocation7 + $0x38] sm:$0xff]
        %v1859 = vld [vmem:[%s3] sm:$0x1]
        %v1861 = vlaneseq
        %v1862 = vshrl.u32 %v1861, 7
        %v1863 = vsub.s32 0, %v1862
        %v1864 = vrot.slane %v1859, %v1863
        %vm1866 = vcmask 523264
        %v1868 = vsel %vm1866, %v1850, 0
        %1870 = vmatprep.subr.mxu0 0.0
        %1871 = vmatpush1.msra.mxu0 %v1851
        %1872 = vmatprep.subr.mxu0 0.0
        %1873 = vmatpush1.msra.mxu0 %v1852
        %1874 = vmatprep.subr.mxu0 0.0
        %1875 = vmatpush1.msra.mxu0 %v1853
        %1876 = vmatprep.subr.mxu0 0.0
        %1877 = vmatpush1.msra.mxu0 %v1854
        %1878 = vmatprep.subr.mxu0 0.0
        %1879 = vmatpush1.msra.mxu0 %v1855
        %1880 = vmatprep.subr.mxu0 0.0
        %1881 = vmatpush1.msra.mxu0 %v1856
        %1882 = vmatprep.subr.mxu0 0.0
        %1883 = vmatpush1.msra.mxu0 %v1857
        %1884 = vmatprep.subr.mxu0 0.0
        %1885 = vmatpush1.msra.mxu0 %v1858
        %1886 = vmatprep.subr.mxu0 0.0
        %1887 = vmatpush1.msra.mxu0 0.0
        %1888 = vmatprep.subr.mxu0 0.0
        %1889 = vmatpush1.msra.mxu0 0.0
        %1890 = vmatprep.subr.mxu0 0.0
        %1891 = vmatpush1.msra.mxu0 0.0
        %1892 = vmatprep.subr.mxu0 0.0
        %1893 = vmatpush1.msra.mxu0 0.0
        %1894 = vmatprep.subr.mxu0 0.0
        %1895 = vmatpush1.msra.mxu0 0.0
        %1896 = vmatprep.subr.mxu0 0.0
        %1897 = vmatpush1.msra.mxu0 0.0
        %1898 = vmatprep.subr.mxu0 0.0
        %1899 = vmatpush1.msra.mxu0 0.0
        %1900 = vmatprep.subr.mxu0 0.0
        %1901 = vmatpush1.msra.mxu0 0.0
        %1902 = vmatprep.subr.mxu0 0.0
        %1903 = vmatpush1.msra.mxu0 0.0
        %1904 = vmatprep.subr.mxu0 0.0
        %1905 = vmatpush1.msra.mxu0 0.0
        %1906 = vmatprep.subr.mxu0 0.0
        %1907 = vmatpush1.msra.mxu0 0.0
        %1908 = vmatprep.subr.mxu0 0.0
        %1909 = vmatpush1.msra.mxu0 0.0
        %1910 = vmatprep.subr.mxu0 0.0
        %1911 = vmatpush1.msra.mxu0 0.0
        %1912 = vmatprep.subr.mxu0 0.0
        %1913 = vmatpush1.msra.mxu0 0.0
        %1914 = vmatprep.subr.mxu0 0.0
        %1915 = vmatpush1.msra.mxu0 0.0
        %1916 = vmatprep.subr.mxu0 0.0
        %1917 = vmatpush1.msra.mxu0 0.0
        %1918 = vmatprep.subr.mxu0 0.0
        %1919 = vmatpush1.msra.mxu0 0.0
        %1920 = vmatprep.subr.mxu0 0.0
        %1921 = vmatpush1.msra.mxu0 0.0
        %1922 = vmatprep.subr.mxu0 0.0
        %1923 = vmatpush1.msra.mxu0 0.0
        %1924 = vmatprep.subr.mxu0 0.0
        %1925 = vmatpush1.msra.mxu0 0.0
        %1926 = vmatprep.subr.mxu0 0.0
        %1927 = vmatpush1.msra.mxu0 0.0
        %1928 = vmatprep.subr.mxu0 0.0
        %1929 = vmatpush1.msra.mxu0 0.0
        %1930 = vmatprep.subr.mxu0 0.0
        %1931 = vmatpush1.msra.mxu0 0.0
        %1932 = vmatprep.subr.mxu0 0.0
        %1933 = vmatpush1.msra.mxu0 0.0
        %1934 = vmatprep.mubr.f32.mxu0 0.0
        %1935 = vmatmul.mubr.f32.gmra.mrb[0].mxu0 %v1868
        %v1936 = vpop.f32.mrb[0].mxu0
        %v1937 = vadd.f32 %v1864, %v1936
        %v1938 = vpop.f32.mrb[0].mxu0
        %1939 = vdwg.mxu0
        %1940 = vst [vmem:[%s232] sm:$0xff] %v1937
        %s1941 = sand.u32 %s120, 1
        %s1942 = scalar_lea.sflag [#allocation6], %s1941
        %s1943 = sand.u32 %s120, 1
        %s1944 = smul.addr %s1943, 8
        %s1945 = scalar_lea.vmem [#allocation9], %s1944
        // Predicated region
        $region45: #{tpu_custom_call.1} parent=35 // pred_check
          %p1946 = pneg %p130
        $region46: #{tpu_custom_call.1} parent=35 // pred_check_branch
          %1948 = sbr.rel (%p1946) target = $region48
        $region47: #{tpu_custom_call.1} parent=35 // pred_region
          %s1950 = ssub.s32 128, 128
          %1951 = vsyncadd %s1942, %s1950
          %s1952 = smul.addr %s23, 128
          %s1953 = scalar_lea.hbm %s4, %s1952
          %s1955 = sshll.u32 %s1945, 4
          %s1956 = int_to_ptr.vmem [resolvable:$true] %s1955
          %1958 = dma.vmem_to_hbm [thread:$0]  %s1956, 128, %s1953, %s1942
        $region48: #{tpu_custom_call.1} parent=35 // pred_fallthru
          _
      $region36: #{tpu_custom_call.1} parent=5 // pred_fallthru
        _
      %p1959 = scmp.le.s32.totalorder 2, %s18
      // Predicated region
      $region49: #{tpu_custom_call.1} parent=5 // pred_check
        %p1960 = pneg %p1959
      $region50: #{tpu_custom_call.1} parent=5 // pred_check_branch
        %1962 = sbr.rel (%p1960) target = $region52
      $region51: #{tpu_custom_call.1} parent=5 // pred_region
        %s1963 = ssub.s32 %s18, 2
        // Predicated region
        $region53: #{tpu_custom_call.1} parent=51 // pred_check
          %p1964 = pneg %p136
        $region54: #{tpu_custom_call.1} parent=51 // pred_check_branch
          %1966 = sbr.rel (%p1964) target = $region56
        $region55: #{tpu_custom_call.1} parent=51 // pred_region
          %s1967 = sand.u32 %s121, 1
          %s1968 = scalar_lea.sflag [#allocation6], %s1967
          %s1969 = sand.u32 %s121, 1
          %s1970 = smul.addr %s1969, 8
          %s1971 = scalar_lea.vmem [#allocation9], %s1970
          %1972 = dma.done %s1968, 128
        $region56: #{tpu_custom_call.1} parent=51 // pred_fallthru
          _
      $region52: #{tpu_custom_call.1} parent=5 // pred_fallthru
        _
    $region6: #{tpu_custom_call.1} parent=1 // loop_footer
      %s22 = sadd.s32 1, %s18
    $region7: #{tpu_custom_call.1} parent=1 // loop_footer_branch
      %17 = sbr.rel target = $region3
    $region8: #{tpu_custom_call.1} parent=1 // loop_exit
      _
    %1973 = vsyncpa [#allocation5], 1
    %s1974 = scalar_lea.sflag [#allocation5], 1
    %1975 = vsyncpa %s1974, 1
    %1976 = vsyncpa [#allocation8], 1
    %1977 = vsyncpa [#allocation6], 1
    %s1978 = scalar_lea.sflag [#allocation6], 1
    %1979 = vsyncpa %s1978, 1

</llo_original>
